<compile_context>
chip_gen: v6e
topology: v6e:2x2x1
jax: 0.10.0
libtpu: 0.0.40
codegen_flags: <defaults>
</compile_context>

<pallas_src>
import functools

import jax
import jax.numpy as jnp
from jax import lax
from jax.experimental import pallas as pl
from jax.experimental.pallas import tpu as pltpu


def _mha_flash_kernel(q_ref, k_ref, v_ref, mask_ref, o_ref,
                      acc_ref, m_ref, l_ref,
                      *, n_heads, d_k, compute_dtype, approx_recip):
    # q_ref: (tq, d_model)   k_ref/v_ref: (tk, d_model)
    # mask_ref: (tq, tk) int8 (nonzero = masked)   o_ref: (tq, d_model)
    # acc_ref: (tq, d_model) f32   m_ref/l_ref: (n_heads, tq, 1) f32
    ki = pl.program_id(2)

    @pl.when(ki == 0)
    def _init():
        m_ref[...] = jnp.full_like(m_ref, -jnp.inf)
        l_ref[...] = jnp.zeros_like(l_ref)
        acc_ref[...] = jnp.zeros_like(acc_ref)

    scale = 1.0 / jnp.sqrt(jnp.float32(d_k))
    # Fold the scale into Q once (S*d_k multiplies instead of S*S).
    q_all = (q_ref[...] * scale).astype(compute_dtype)      # (tq, d_model)
    k_all = k_ref[...].astype(compute_dtype)                 # (tk, d_model)
    v_all = v_ref[...].astype(compute_dtype)                 # (tk, d_model)

    # Additive mask bias computed once per (q,kv) tile, shared by all heads.
    mask_bias = mask_ref[...].astype(jnp.float32) * jnp.float32(-1e9)  # (tq, tk)

    acc_prev = acc_ref[...]                                  # (tq, d_model) f32
    new_acc = []
    # n_heads is small & static; each head is a lane-contiguous d_k slice of
    # d_model (matches the PyTorch view(B,-1,H,d_k) layout).
    for h in range(n_heads):
        sl = slice(h * d_k, (h + 1) * d_k)
        q_h = q_all[:, sl]
        k_h = k_all[:, sl]
        v_h = v_all[:, sl]

        # Contract last dims of both operands -> no k.T relayout before the MXU.
        s = lax.dot_general(q_h, k_h, (((1,), (1,)), ((), ())),
                            preferred_element_type=jnp.float32)   # (tq, tk)
        s = s + mask_bias

        m_prev = m_ref[h]                                    # (tq, 1)
        m_new = jnp.maximum(m_prev, jnp.max(s, axis=-1, keepdims=True))
        alpha = jnp.exp(m_prev - m_new)
        p = jnp.exp(s - m_new)                               # f32
        l_ref[h] = alpha * l_ref[h] + jnp.sum(p, axis=-1, keepdims=True)
        m_ref[h] = m_new

        pv = jnp.dot(p.astype(compute_dtype), v_h,
                     preferred_element_type=jnp.float32)     # (tq, d_k)
        new_acc.append(alpha * acc_prev[:, sl] + pv)

    # One full-width (lane-dense) scratch store per kv step.
    acc_ref[...] = jnp.concatenate(new_acc, axis=-1)

    @pl.when(ki == pl.num_programs(2) - 1)
    def _finalize():
        acc = acc_ref[...]
        outs = []
        for h in range(n_heads):
            inv_l = pl.reciprocal(l_ref[h], approx=approx_recip)   # (tq, 1)
            outs.append(acc[:, h * d_k:(h + 1) * d_k] * inv_l)
        # Single lane-dense (tq, d_model) store.
        o_ref[...] = jnp.concatenate(outs, axis=-1).astype(o_ref.dtype)


def multi_head_attention(Q, K, V, attn_mask, *, n_heads,
                         q_tile=256, kv_tile=512,
                         compute_dtype=jnp.bfloat16):
    """Forward pass matching the PyTorch MultiHeadAttention module.

    Q: (B, Sq, d_model), K/V: (B, Skv, d_model) float32
    attn_mask: (B, Sq, Skv) bool (True = masked)
    returns: (B, Sq, d_model) float32
    """
    B, Sq, d_model = Q.shape
    Skv = K.shape[1]
    assert d_model % n_heads == 0
    d_k = d_model // n_heads
    assert K.shape == (B, Skv, d_model) and V.shape == (B, Skv, d_model)
    assert attn_mask.shape == (B, Sq, Skv)

    tq = min(q_tile, Sq)
    tk = min(kv_tile, Skv)
    # TODO(synk): handle ragged tails with masked tiles; for now require
    # divisibility (holds for the shapes this module is used with).
    assert Sq % tq == 0 and Skv % tk == 0, "sequence lengths must divide tiles"

    mask_i8 = attn_mask.astype(jnp.int8)   # 4x less HBM traffic than int32

    grid = (B, Sq // tq, Skv // tk)        # KV (reduction) axis last
    kernel = functools.partial(
        _mha_flash_kernel,
        n_heads=n_heads, d_k=d_k, compute_dtype=compute_dtype,
        approx_recip=(compute_dtype != jnp.float32))

    # Heads are indexed straight out of (B, S, d_model): no XLA transposes.
    q_spec = pl.BlockSpec((None, tq, d_model), lambda b, qi, ki: (b, qi, 0))
    kv_spec = pl.BlockSpec((None, tk, d_model), lambda b, qi, ki: (b, ki, 0))
    mask_spec = pl.BlockSpec((None, tq, tk), lambda b, qi, ki: (b, qi, ki))
    out_spec = pl.BlockSpec((None, tq, d_model), lambda b, qi, ki: (b, qi, 0))

    return pl.pallas_call(
        kernel,
        out_shape=jax.ShapeDtypeStruct((B, Sq, d_model), Q.dtype),
        grid_spec=pltpu.PrefetchScalarGridSpec(
            num_scalar_prefetch=0,
            grid=grid,
            in_specs=[q_spec, kv_spec, kv_spec, mask_spec],
            out_specs=out_spec,
            scratch_shapes=[
                pltpu.VMEM((tq, d_model), jnp.float32),        # acc
                pltpu.VMEM((n_heads, tq, 1), jnp.float32),     # running max m
                pltpu.VMEM((n_heads, tq, 1), jnp.float32),     # running sum l
            ]),
        compiler_params=pltpu.CompilerParams(
            dimension_semantics=("parallel", "parallel", "arbitrary"),
            vmem_limit_bytes=48 * 1024 * 1024,  # headroom; fits v7x's 64 MiB
        ),
    )(Q, K, V, mask_i8)


def _reference(Q, K, V, attn_mask, n_heads, compute_dtype=jnp.float32):
    """Plain-JAX reference matching the PyTorch module (optionally in the same
    mixed precision as the kernel)."""
    B, S, d_model = Q.shape
    d_k = d_model // n_heads

    def split(x):
        return x.reshape(B, -1, n_heads, d_k).transpose(0, 2, 1, 3)

    scale = 1.0 / jnp.sqrt(jnp.float32(d_k))
    q = (split(Q) * scale).astype(compute_dtype)
    k = split(K).astype(compute_dtype)
    v = split(V).astype(compute_dtype)
    s = jnp.einsum("bhqd,bhkd->bhqk", q, k,
                   preferred_element_type=jnp.float32)
    s = jnp.where(attn_mask[:, None, :, :], jnp.float32(-1e9), s)
    w = jax.nn.softmax(s, axis=-1)
    o = jnp.einsum("bhqk,bhkd->bhqd", w.astype(compute_dtype), v,
                   preferred_element_type=jnp.float32)
    return o.transpose(0, 2, 1, 3).reshape(B, -1, d_model).astype(Q.dtype)


def _causal_mask(B, S):
    m = jnp.triu(jnp.ones((S, S), dtype=jnp.bool_), k=1)
    return jnp.broadcast_to(m[None, :, :], (B, S, S))


if __name__ == "__main__":
    root = jax.random.PRNGKey(0)
    k1, k2 = jax.random.split(root)

    # ---- Test 1: module-sized shapes (B=2, S=8, d_model=32, H=4) -----------
    B, S, d_model, n_heads = 2, 8, 32, 4
    kq, kk, kv = jax.random.split(k1, 3)
    Q = jax.random.normal(kq, (B, S, d_model), dtype=jnp.float32)
    K = jax.random.normal(kk, (B, S, d_model), dtype=jnp.float32)
    V = jax.random.normal(kv, (B, S, d_model), dtype=jnp.float32)
    attn_mask = _causal_mask(B, S)

    # f32 compute path: matches the PyTorch module numerics tightly.
    out_f32 = jax.block_until_ready(
        multi_head_attention(Q, K, V, attn_mask, n_heads=n_heads,
                             compute_dtype=jnp.float32))
    ref_f32 = _reference(Q, K, V, attn_mask, n_heads, jnp.float32)
    assert out_f32.shape == (B, S, d_model)
    assert jnp.allclose(out_f32, ref_f32, atol=1e-4, rtol=1e-4), "f32 mismatch"

    # bf16 MXU path (flash-attention mixed precision, f32 accumulation).
    out_bf16 = jax.block_until_ready(
        multi_head_attention(Q, K, V, attn_mask, n_heads=n_heads,
                             compute_dtype=jnp.bfloat16))
    ref_bf16 = _reference(Q, K, V, attn_mask, n_heads, jnp.bfloat16)
    assert jnp.allclose(out_bf16, ref_bf16, atol=3e-2, rtol=3e-2), "bf16 mismatch"

    # ---- Test 2: multi-tile grid, lane-aligned heads (exercises online softmax
    #      across several KV tiles). B=1, S=256, d_model=256, H=2 (d_k=128). ---
    B2, S2, dm2, H2 = 1, 256, 256, 2
    kq2, kk2, kv2 = jax.random.split(k2, 3)
    Q2 = jax.random.normal(kq2, (B2, S2, dm2), dtype=jnp.float32)
    K2 = jax.random.normal(kk2, (B2, S2, dm2), dtype=jnp.float32)
    V2 = jax.random.normal(kv2, (B2, S2, dm2), dtype=jnp.float32)
    mask2 = _causal_mask(B2, S2)

    out2 = jax.block_until_ready(
        multi_head_attention(Q2, K2, V2, mask2, n_heads=H2,
                             q_tile=128, kv_tile=128,
                             compute_dtype=jnp.float32))
    ref2 = _reference(Q2, K2, V2, mask2, H2, jnp.float32)
    assert out2.shape == (B2, S2, dm2)
    assert jnp.allclose(out2, ref2, atol=1e-4, rtol=1e-4), "tiled f32 mismatch"

    print("KERNEL_OK")
</pallas_src>

<mosaic_0001>
module attributes {stable_mosaic.version = 11 : i64} {
  func.func @_mha_flash_kernel(%arg0: i32, %arg1: i32, %arg2: i32, %arg3: memref<1x8x32xf32, #tpu.memory_space<vmem>>, %arg4: memref<1x8x32xf32, #tpu.memory_space<vmem>>, %arg5: memref<1x8x32xf32, #tpu.memory_space<vmem>>, %arg6: memref<1x8x8xi8, #tpu.memory_space<vmem>>, %arg7: memref<1x8x32xf32, #tpu.memory_space<vmem>>, %arg8: memref<8x32xf32, #tpu.memory_space<vmem>>, %arg9: memref<4x8x1xf32, #tpu.memory_space<vmem>>, %arg10: memref<4x8x1xf32, #tpu.memory_space<vmem>>) attributes {dimension_semantics = [#tpu.dimension_semantics<parallel>, #tpu.dimension_semantics<parallel>, #tpu.dimension_semantics<arbitrary>], iteration_bounds = array<i64: 2, 1, 1>, scalar_prefetch = 0 : i64, scratch_operands = 3 : i64, tpu.core_type = #tpu.core_type<tc>, window_params = [{transform_indices = @transform_0, window_bounds = array<i64: 1, 8, 32>}, {transform_indices = @transform_1, window_bounds = array<i64: 1, 8, 32>}, {transform_indices = @transform_2, window_bounds = array<i64: 1, 8, 32>}, {transform_indices = @transform_3, window_bounds = array<i64: 1, 8, 8>}, {transform_indices = @transform_4, window_bounds = array<i64: 1, 8, 32>}]} {
    %c0_i32 = arith.constant 0 : i32
    %0 = arith.cmpi eq, %arg2, %c0_i32 : i32
    %1 = arith.extui %0 : i1 to i32
    %c0_i32_0 = arith.constant 0 : i32
    %2 = arith.cmpi ne, %1, %c0_i32_0 : i32
    scf.if %2 {
      %cst_81 = arith.constant 0xFF800000 : f32
      %152 = vector.broadcast %cst_81 : f32 to vector<4x8x1xf32>
      %c0_82 = arith.constant 0 : index
      %c0_83 = arith.constant 0 : index
      %c0_84 = arith.constant 0 : index
      %153 = vector.load %arg9[%c0_82, %c0_83, %c0_84] : memref<4x8x1xf32, #tpu.memory_space<vmem>>, vector<4x8x1xf32>
      tpu.vector_store %arg9[%c0_82, %c0_83, %c0_84], %152 {strides = array<i32>} : memref<4x8x1xf32, #tpu.memory_space<vmem>>, vector<4x8x1xf32>,
      %cst_85 = arith.constant 0.000000e+00 : f32
      %154 = vector.broadcast %cst_85 : f32 to vector<4x8x1xf32>
      %c0_86 = arith.constant 0 : index
      %c0_87 = arith.constant 0 : index
      %c0_88 = arith.constant 0 : index
      %155 = vector.load %arg10[%c0_86, %c0_87, %c0_88] : memref<4x8x1xf32, #tpu.memory_space<vmem>>, vector<4x8x1xf32>
      tpu.vector_store %arg10[%c0_86, %c0_87, %c0_88], %154 {strides = array<i32>} : memref<4x8x1xf32, #tpu.memory_space<vmem>>, vector<4x8x1xf32>,
      %cst_89 = arith.constant 0.000000e+00 : f32
      %156 = vector.broadcast %cst_89 : f32 to vector<8x32xf32>
      %c0_90 = arith.constant 0 : index
      %c0_91 = arith.constant 0 : index
      %157 = vector.load %arg8[%c0_90, %c0_91] : memref<8x32xf32, #tpu.memory_space<vmem>>, vector<8x32xf32>
      tpu.vector_store %arg8[%c0_90, %c0_91], %156 {strides = array<i32>} : memref<8x32xf32, #tpu.memory_space<vmem>>, vector<8x32xf32>,
    } else {
    }
    %cst = arith.constant 8.000000e+00 : f32
    %3 = math.sqrt %cst : f32
    %cst_1 = arith.constant 1.000000e+00 : f32
    %4 = arith.divf %cst_1, %3 : f32
    %c0 = arith.constant 0 : index
    %c0_2 = arith.constant 0 : index
    %c0_3 = arith.constant 0 : index
    %5 = vector.load %arg3[%c0, %c0_2, %c0_3] : memref<1x8x32xf32, #tpu.memory_space<vmem>>, vector<1x8x32xf32>
    %6 = vector.shape_cast %5 : vector<1x8x32xf32> to vector<8x32xf32>
    %7 = vector.broadcast %4 : f32 to vector<8x32xf32>
    %8 = arith.mulf %6, %7 : vector<8x32xf32>
    %c0_4 = arith.constant 0 : index
    %c0_5 = arith.constant 0 : index
    %c0_6 = arith.constant 0 : index
    %9 = vector.load %arg4[%c0_4, %c0_5, %c0_6] : memref<1x8x32xf32, #tpu.memory_space<vmem>>, vector<1x8x32xf32>
    %10 = vector.shape_cast %9 : vector<1x8x32xf32> to vector<8x32xf32>
    %c0_7 = arith.constant 0 : index
    %c0_8 = arith.constant 0 : index
    %c0_9 = arith.constant 0 : index
    %11 = vector.load %arg5[%c0_7, %c0_8, %c0_9] : memref<1x8x32xf32, #tpu.memory_space<vmem>>, vector<1x8x32xf32>
    %12 = vector.shape_cast %11 : vector<1x8x32xf32> to vector<8x32xf32>
    %c0_10 = arith.constant 0 : index
    %c0_11 = arith.constant 0 : index
    %c0_12 = arith.constant 0 : index
    %13 = vector.load %arg6[%c0_10, %c0_11, %c0_12] : memref<1x8x8xi8, #tpu.memory_space<vmem>>, vector<1x8x8xi8>
    %14 = vector.shape_cast %13 : vector<1x8x8xi8> to vector<8x8xi8>
    %15 = arith.sitofp %14 : vector<8x8xi8> to vector<8x8xf32>
    %cst_13 = arith.constant -1.000000e+09 : f32
    %16 = vector.broadcast %cst_13 : f32 to vector<8x8xf32>
    %17 = arith.mulf %15, %16 : vector<8x8xf32>
    %c0_14 = arith.constant 0 : index
    %c0_15 = arith.constant 0 : index
    %18 = vector.load %arg8[%c0_14, %c0_15] : memref<8x32xf32, #tpu.memory_space<vmem>>, vector<8x32xf32>
    %19 = vector.extract_strided_slice %8 {offsets = [0, 0], sizes = [8, 8], strides = [1, 1]} : vector<8x32xf32> to vector<8x8xf32>
    %20 = vector.extract_strided_slice %10 {offsets = [0, 0], sizes = [8, 8], strides = [1, 1]} : vector<8x32xf32> to vector<8x8xf32>
    %21 = vector.extract_strided_slice %12 {offsets = [0, 0], sizes = [8, 8], strides = [1, 1]} : vector<8x32xf32> to vector<8x8xf32>
    %cst_16 = arith.constant dense<0.000000e+00> : vector<8x8xf32>
    %22 = tpu.matmul %19, %20, %cst_16 {dimension_numbers = #tpu.dot_dimension_numbers<[1], [1], [0], [0], [0, 0, 1, 0], [], []>} : vector<8x8xf32>, vector<8x8xf32>, vector<8x8xf32> -> vector<8x8xf32>
    %23 = arith.addf %22, %17 : vector<8x8xf32>
    %c0_17 = arith.constant 0 : index
    %c0_18 = arith.constant 0 : index
    %c0_19 = arith.constant 0 : index
    %24 = vector.load %arg9[%c0_17, %c0_18, %c0_19] : memref<4x8x1xf32, #tpu.memory_space<vmem>>, vector<1x8x1xf32>
    %25 = vector.shape_cast %24 : vector<1x8x1xf32> to vector<8x1xf32>
    %cst_20 = arith.constant dense<0xFF800000> : vector<8xf32>
    %26 = vector.multi_reduction <maximumf>, %23, %cst_20 [1] : vector<8x8xf32> to vector<8xf32>
    %27 = vector.shape_cast %26 : vector<8xf32> to vector<8x1xf32>
    %28 = arith.maximumf %25, %27 : vector<8x1xf32>
    %29 = arith.subf %25, %28 : vector<8x1xf32>
    %30 = math.exp %29 : vector<8x1xf32>
    %31 = vector.broadcast %28 : vector<8x1xf32> to vector<8x8xf32>
    %32 = arith.subf %23, %31 : vector<8x8xf32>
    %33 = math.exp %32 : vector<8x8xf32>
    %c0_21 = arith.constant 0 : index
    %c0_22 = arith.constant 0 : index
    %c0_23 = arith.constant 0 : index
    %34 = vector.load %arg10[%c0_21, %c0_22, %c0_23] : memref<4x8x1xf32, #tpu.memory_space<vmem>>, vector<1x8x1xf32>
    %35 = vector.shape_cast %34 : vector<1x8x1xf32> to vector<8x1xf32>
    %36 = arith.mulf %30, %35 : vector<8x1xf32>
    %cst_24 = arith.constant dense<0.000000e+00> : vector<8xf32>
    %37 = vector.multi_reduction <add>, %33, %cst_24 [1] : vector<8x8xf32> to vector<8xf32>
    %38 = vector.shape_cast %37 : vector<8xf32> to vector<8x1xf32>
    %39 = arith.addf %36, %38 : vector<8x1xf32>
    %c0_25 = arith.constant 0 : index
    %c0_26 = arith.constant 0 : index
    %c0_27 = arith.constant 0 : index
    %40 = vector.load %arg10[%c0_25, %c0_26, %c0_27] : memref<4x8x1xf32, #tpu.memory_space<vmem>>, vector<1x8x1xf32>
    %41 = vector.shape_cast %40 : vector<1x8x1xf32> to vector<8x1xf32>
    %42 = vector.shape_cast %39 : vector<8x1xf32> to vector<1x8x1xf32>
    tpu.vector_store %arg10[%c0_25, %c0_26, %c0_27], %42 {strides = array<i32>} : memref<4x8x1xf32, #tpu.memory_space<vmem>>, vector<1x8x1xf32>,
    %c0_28 = arith.constant 0 : index
    %c0_29 = arith.constant 0 : index
    %c0_30 = arith.constant 0 : index
    %43 = vector.load %arg9[%c0_28, %c0_29, %c0_30] : memref<4x8x1xf32, #tpu.memory_space<vmem>>, vector<1x8x1xf32>
    %44 = vector.shape_cast %43 : vector<1x8x1xf32> to vector<8x1xf32>
    %45 = vector.shape_cast %28 : vector<8x1xf32> to vector<1x8x1xf32>
    tpu.vector_store %arg9[%c0_28, %c0_29, %c0_30], %45 {strides = array<i32>} : memref<4x8x1xf32, #tpu.memory_space<vmem>>, vector<1x8x1xf32>,
    %cst_31 = arith.constant dense<0.000000e+00> : vector<8x8xf32>
    %46 = tpu.matmul %33, %21, %cst_31 {dimension_numbers = #tpu.dot_dimension_numbers<[1], [0], [0], [1], [0, 0, 1, 1], [], []>} : vector<8x8xf32>, vector<8x8xf32>, vector<8x8xf32> -> vector<8x8xf32>
    %47 = vector.extract_strided_slice %18 {offsets = [0, 0], sizes = [8, 8], strides = [1, 1]} : vector<8x32xf32> to vector<8x8xf32>
    %48 = vector.broadcast %30 : vector<8x1xf32> to vector<8x8xf32>
    %49 = arith.mulf %48, %47 : vector<8x8xf32>
    %50 = arith.addf %49, %46 : vector<8x8xf32>
    %51 = vector.extract_strided_slice %8 {offsets = [0, 8], sizes = [8, 8], strides = [1, 1]} : vector<8x32xf32> to vector<8x8xf32>
    %52 = vector.extract_strided_slice %10 {offsets = [0, 8], sizes = [8, 8], strides = [1, 1]} : vector<8x32xf32> to vector<8x8xf32>
    %53 = vector.extract_strided_slice %12 {offsets = [0, 8], sizes = [8, 8], strides = [1, 1]} : vector<8x32xf32> to vector<8x8xf32>
    %cst_32 = arith.constant dense<0.000000e+00> : vector<8x8xf32>
    %54 = tpu.matmul %51, %52, %cst_32 {dimension_numbers = #tpu.dot_dimension_numbers<[1], [1], [0], [0], [0, 0, 1, 0], [], []>} : vector<8x8xf32>, vector<8x8xf32>, vector<8x8xf32> -> vector<8x8xf32>
    %55 = arith.addf %54, %17 : vector<8x8xf32>
    %c1 = arith.constant 1 : index
    %c0_33 = arith.constant 0 : index
    %c0_34 = arith.constant 0 : index
    %56 = vector.load %arg9[%c1, %c0_33, %c0_34] : memref<4x8x1xf32, #tpu.memory_space<vmem>>, vector<1x8x1xf32>
    %57 = vector.shape_cast %56 : vector<1x8x1xf32> to vector<8x1xf32>
    %cst_35 = arith.constant dense<0xFF800000> : vector<8xf32>
    %58 = vector.multi_reduction <maximumf>, %55, %cst_35 [1] : vector<8x8xf32> to vector<8xf32>
    %59 = vector.shape_cast %58 : vector<8xf32> to vector<8x1xf32>
    %60 = arith.maximumf %57, %59 : vector<8x1xf32>
    %61 = arith.subf %57, %60 : vector<8x1xf32>
    %62 = math.exp %61 : vector<8x1xf32>
    %63 = vector.broadcast %60 : vector<8x1xf32> to vector<8x8xf32>
    %64 = arith.subf %55, %63 : vector<8x8xf32>
    %65 = math.exp %64 : vector<8x8xf32>
    %c1_36 = arith.constant 1 : index
    %c0_37 = arith.constant 0 : index
    %c0_38 = arith.constant 0 : index
    %66 = vector.load %arg10[%c1_36, %c0_37, %c0_38] : memref<4x8x1xf32, #tpu.memory_space<vmem>>, vector<1x8x1xf32>
    %67 = vector.shape_cast %66 : vector<1x8x1xf32> to vector<8x1xf32>
    %68 = arith.mulf %62, %67 : vector<8x1xf32>
    %cst_39 = arith.constant dense<0.000000e+00> : vector<8xf32>
    %69 = vector.multi_reduction <add>, %65, %cst_39 [1] : vector<8x8xf32> to vector<8xf32>
    %70 = vector.shape_cast %69 : vector<8xf32> to vector<8x1xf32>
    %71 = arith.addf %68, %70 : vector<8x1xf32>
    %c1_40 = arith.constant 1 : index
    %c0_41 = arith.constant 0 : index
    %c0_42 = arith.constant 0 : index
    %72 = vector.load %arg10[%c1_40, %c0_41, %c0_42] : memref<4x8x1xf32, #tpu.memory_space<vmem>>, vector<1x8x1xf32>
    %73 = vector.shape_cast %72 : vector<1x8x1xf32> to vector<8x1xf32>
    %74 = vector.shape_cast %71 : vector<8x1xf32> to vector<1x8x1xf32>
    tpu.vector_store %arg10[%c1_40, %c0_41, %c0_42], %74 {strides = array<i32>} : memref<4x8x1xf32, #tpu.memory_space<vmem>>, vector<1x8x1xf32>,
    %c1_43 = arith.constant 1 : index
    %c0_44 = arith.constant 0 : index
    %c0_45 = arith.constant 0 : index
    %75 = vector.load %arg9[%c1_43, %c0_44, %c0_45] : memref<4x8x1xf32, #tpu.memory_space<vmem>>, vector<1x8x1xf32>
    %76 = vector.shape_cast %75 : vector<1x8x1xf32> to vector<8x1xf32>
    %77 = vector.shape_cast %60 : vector<8x1xf32> to vector<1x8x1xf32>
    tpu.vector_store %arg9[%c1_43, %c0_44, %c0_45], %77 {strides = array<i32>} : memref<4x8x1xf32, #tpu.memory_space<vmem>>, vector<1x8x1xf32>,
    %cst_46 = arith.constant dense<0.000000e+00> : vector<8x8xf32>
    %78 = tpu.matmul %65, %53, %cst_46 {dimension_numbers = #tpu.dot_dimension_numbers<[1], [0], [0], [1], [0, 0, 1, 1], [], []>} : vector<8x8xf32>, vector<8x8xf32>, vector<8x8xf32> -> vector<8x8xf32>
    %79 = vector.extract_strided_slice %18 {offsets = [0, 8], sizes = [8, 8], strides = [1, 1]} : vector<8x32xf32> to vector<8x8xf32>
    %80 = vector.broadcast %62 : vector<8x1xf32> to vector<8x8xf32>
    %81 = arith.mulf %80, %79 : vector<8x8xf32>
    %82 = arith.addf %81, %78 : vector<8x8xf32>
    %83 = vector.extract_strided_slice %8 {offsets = [0, 16], sizes = [8, 8], strides = [1, 1]} : vector<8x32xf32> to vector<8x8xf32>
    %84 = vector.extract_strided_slice %10 {offsets = [0, 16], sizes = [8, 8], strides = [1, 1]} : vector<8x32xf32> to vector<8x8xf32>
    %85 = vector.extract_strided_slice %12 {offsets = [0, 16], sizes = [8, 8], strides = [1, 1]} : vector<8x32xf32> to vector<8x8xf32>
    %cst_47 = arith.constant dense<0.000000e+00> : vector<8x8xf32>
    %86 = tpu.matmul %83, %84, %cst_47 {dimension_numbers = #tpu.dot_dimension_numbers<[1], [1], [0], [0], [0, 0, 1, 0], [], []>} : vector<8x8xf32>, vector<8x8xf32>, vector<8x8xf32> -> vector<8x8xf32>
    %87 = arith.addf %86, %17 : vector<8x8xf32>
    %c2 = arith.constant 2 : index
    %c0_48 = arith.constant 0 : index
    %c0_49 = arith.constant 0 : index
    %88 = vector.load %arg9[%c2, %c0_48, %c0_49] : memref<4x8x1xf32, #tpu.memory_space<vmem>>, vector<1x8x1xf32>
    %89 = vector.shape_cast %88 : vector<1x8x1xf32> to vector<8x1xf32>
    %cst_50 = arith.constant dense<0xFF800000> : vector<8xf32>
    %90 = vector.multi_reduction <maximumf>, %87, %cst_50 [1] : vector<8x8xf32> to vector<8xf32>
    %91 = vector.shape_cast %90 : vector<8xf32> to vector<8x1xf32>
    %92 = arith.maximumf %89, %91 : vector<8x1xf32>
    %93 = arith.subf %89, %92 : vector<8x1xf32>
    %94 = math.exp %93 : vector<8x1xf32>
    %95 = vector.broadcast %92 : vector<8x1xf32> to vector<8x8xf32>
    %96 = arith.subf %87, %95 : vector<8x8xf32>
    %97 = math.exp %96 : vector<8x8xf32>
    %c2_51 = arith.constant 2 : index
    %c0_52 = arith.constant 0 : index
    %c0_53 = arith.constant 0 : index
    %98 = vector.load %arg10[%c2_51, %c0_52, %c0_53] : memref<4x8x1xf32, #tpu.memory_space<vmem>>, vector<1x8x1xf32>
    %99 = vector.shape_cast %98 : vector<1x8x1xf32> to vector<8x1xf32>
    %100 = arith.mulf %94, %99 : vector<8x1xf32>
    %cst_54 = arith.constant dense<0.000000e+00> : vector<8xf32>
    %101 = vector.multi_reduction <add>, %97, %cst_54 [1] : vector<8x8xf32> to vector<8xf32>
    %102 = vector.shape_cast %101 : vector<8xf32> to vector<8x1xf32>
    %103 = arith.addf %100, %102 : vector<8x1xf32>
    %c2_55 = arith.constant 2 : index
    %c0_56 = arith.constant 0 : index
    %c0_57 = arith.constant 0 : index
    %104 = vector.load %arg10[%c2_55, %c0_56, %c0_57] : memref<4x8x1xf32, #tpu.memory_space<vmem>>, vector<1x8x1xf32>
    %105 = vector.shape_cast %104 : vector<1x8x1xf32> to vector<8x1xf32>
    %106 = vector.shape_cast %103 : vector<8x1xf32> to vector<1x8x1xf32>
    tpu.vector_store %arg10[%c2_55, %c0_56, %c0_57], %106 {strides = array<i32>} : memref<4x8x1xf32, #tpu.memory_space<vmem>>, vector<1x8x1xf32>,
    %c2_58 = arith.constant 2 : index
    %c0_59 = arith.constant 0 : index
    %c0_60 = arith.constant 0 : index
    %107 = vector.load %arg9[%c2_58, %c0_59, %c0_60] : memref<4x8x1xf32, #tpu.memory_space<vmem>>, vector<1x8x1xf32>
    %108 = vector.shape_cast %107 : vector<1x8x1xf32> to vector<8x1xf32>
    %109 = vector.shape_cast %92 : vector<8x1xf32> to vector<1x8x1xf32>
    tpu.vector_store %arg9[%c2_58, %c0_59, %c0_60], %109 {strides = array<i32>} : memref<4x8x1xf32, #tpu.memory_space<vmem>>, vector<1x8x1xf32>,
    %cst_61 = arith.constant dense<0.000000e+00> : vector<8x8xf32>
    %110 = tpu.matmul %97, %85, %cst_61 {dimension_numbers = #tpu.dot_dimension_numbers<[1], [0], [0], [1], [0, 0, 1, 1], [], []>} : vector<8x8xf32>, vector<8x8xf32>, vector<8x8xf32> -> vector<8x8xf32>
    %111 = vector.extract_strided_slice %18 {offsets = [0, 16], sizes = [8, 8], strides = [1, 1]} : vector<8x32xf32> to vector<8x8xf32>
    %112 = vector.broadcast %94 : vector<8x1xf32> to vector<8x8xf32>
    %113 = arith.mulf %112, %111 : vector<8x8xf32>
    %114 = arith.addf %113, %110 : vector<8x8xf32>
    %115 = vector.extract_strided_slice %8 {offsets = [0, 24], sizes = [8, 8], strides = [1, 1]} : vector<8x32xf32> to vector<8x8xf32>
    %116 = vector.extract_strided_slice %10 {offsets = [0, 24], sizes = [8, 8], strides = [1, 1]} : vector<8x32xf32> to vector<8x8xf32>
    %117 = vector.extract_strided_slice %12 {offsets = [0, 24], sizes = [8, 8], strides = [1, 1]} : vector<8x32xf32> to vector<8x8xf32>
    %cst_62 = arith.constant dense<0.000000e+00> : vector<8x8xf32>
    %118 = tpu.matmul %115, %116, %cst_62 {dimension_numbers = #tpu.dot_dimension_numbers<[1], [1], [0], [0], [0, 0, 1, 0], [], []>} : vector<8x8xf32>, vector<8x8xf32>, vector<8x8xf32> -> vector<8x8xf32>
    %119 = arith.addf %118, %17 : vector<8x8xf32>
    %c3 = arith.constant 3 : index
    %c0_63 = arith.constant 0 : index
    %c0_64 = arith.constant 0 : index
    %120 = vector.load %arg9[%c3, %c0_63, %c0_64] : memref<4x8x1xf32, #tpu.memory_space<vmem>>, vector<1x8x1xf32>
    %121 = vector.shape_cast %120 : vector<1x8x1xf32> to vector<8x1xf32>
    %cst_65 = arith.constant dense<0xFF800000> : vector<8xf32>
    %122 = vector.multi_reduction <maximumf>, %119, %cst_65 [1] : vector<8x8xf32> to vector<8xf32>
    %123 = vector.shape_cast %122 : vector<8xf32> to vector<8x1xf32>
    %124 = arith.maximumf %121, %123 : vector<8x1xf32>
    %125 = arith.subf %121, %124 : vector<8x1xf32>
    %126 = math.exp %125 : vector<8x1xf32>
    %127 = vector.broadcast %124 : vector<8x1xf32> to vector<8x8xf32>
    %128 = arith.subf %119, %127 : vector<8x8xf32>
    %129 = math.exp %128 : vector<8x8xf32>
    %c3_66 = arith.constant 3 : index
    %c0_67 = arith.constant 0 : index
    %c0_68 = arith.constant 0 : index
    %130 = vector.load %arg10[%c3_66, %c0_67, %c0_68] : memref<4x8x1xf32, #tpu.memory_space<vmem>>, vector<1x8x1xf32>
    %131 = vector.shape_cast %130 : vector<1x8x1xf32> to vector<8x1xf32>
    %132 = arith.mulf %126, %131 : vector<8x1xf32>
    %cst_69 = arith.constant dense<0.000000e+00> : vector<8xf32>
    %133 = vector.multi_reduction <add>, %129, %cst_69 [1] : vector<8x8xf32> to vector<8xf32>
    %134 = vector.shape_cast %133 : vector<8xf32> to vector<8x1xf32>
    %135 = arith.addf %132, %134 : vector<8x1xf32>
    %c3_70 = arith.constant 3 : index
    %c0_71 = arith.constant 0 : index
    %c0_72 = arith.constant 0 : index
    %136 = vector.load %arg10[%c3_70, %c0_71, %c0_72] : memref<4x8x1xf32, #tpu.memory_space<vmem>>, vector<1x8x1xf32>
    %137 = vector.shape_cast %136 : vector<1x8x1xf32> to vector<8x1xf32>
    %138 = vector.shape_cast %135 : vector<8x1xf32> to vector<1x8x1xf32>
    tpu.vector_store %arg10[%c3_70, %c0_71, %c0_72], %138 {strides = array<i32>} : memref<4x8x1xf32, #tpu.memory_space<vmem>>, vector<1x8x1xf32>,
    %c3_73 = arith.constant 3 : index
    %c0_74 = arith.constant 0 : index
    %c0_75 = arith.constant 0 : index
    %139 = vector.load %arg9[%c3_73, %c0_74, %c0_75] : memref<4x8x1xf32, #tpu.memory_space<vmem>>, vector<1x8x1xf32>
    %140 = vector.shape_cast %139 : vector<1x8x1xf32> to vector<8x1xf32>
    %141 = vector.shape_cast %124 : vector<8x1xf32> to vector<1x8x1xf32>
    tpu.vector_store %arg9[%c3_73, %c0_74, %c0_75], %141 {strides = array<i32>} : memref<4x8x1xf32, #tpu.memory_space<vmem>>, vector<1x8x1xf32>,
    %cst_76 = arith.constant dense<0.000000e+00> : vector<8x8xf32>
    %142 = tpu.matmul %129, %117, %cst_76 {dimension_numbers = #tpu.dot_dimension_numbers<[1], [0], [0], [1], [0, 0, 1, 1], [], []>} : vector<8x8xf32>, vector<8x8xf32>, vector<8x8xf32> -> vector<8x8xf32>
    %143 = vector.extract_strided_slice %18 {offsets = [0, 24], sizes = [8, 8], strides = [1, 1]} : vector<8x32xf32> to vector<8x8xf32>
    %144 = vector.broadcast %126 : vector<8x1xf32> to vector<8x8xf32>
    %145 = arith.mulf %144, %143 : vector<8x8xf32>
    %146 = arith.addf %145, %142 : vector<8x8xf32>
    %147 = tpu.concatenate %50, %82, %114, %146 in 1 : vector<8x8xf32>, vector<8x8xf32>, vector<8x8xf32>, vector<8x8xf32> -> vector<8x32xf32>
    %c0_77 = arith.constant 0 : index
    %c0_78 = arith.constant 0 : index
    %148 = vector.load %arg8[%c0_77, %c0_78] : memref<8x32xf32, #tpu.memory_space<vmem>>, vector<8x32xf32>
    tpu.vector_store %arg8[%c0_77, %c0_78], %147 {strides = array<i32>} : memref<8x32xf32, #tpu.memory_space<vmem>>, vector<8x32xf32>,
    %c0_i32_79 = arith.constant 0 : i32
    %149 = arith.cmpi eq, %arg2, %c0_i32_79 : i32
    %150 = arith.extui %149 : i1 to i32
    %c0_i32_80 = arith.constant 0 : i32
    %151 = arith.cmpi ne, %150, %c0_i32_80 : i32
    scf.if %151 {
      %c0_81 = arith.constant 0 : index
      %c0_82 = arith.constant 0 : index
      %152 = vector.load %arg8[%c0_81, %c0_82] : memref<8x32xf32, #tpu.memory_space<vmem>>, vector<8x32xf32>
      %c0_83 = arith.constant 0 : index
      %c0_84 = arith.constant 0 : index
      %c0_85 = arith.constant 0 : index
      %153 = vector.load %arg10[%c0_83, %c0_84, %c0_85] : memref<4x8x1xf32, #tpu.memory_space<vmem>>, vector<1x8x1xf32>
      %154 = vector.shape_cast %153 : vector<1x8x1xf32> to vector<8x1xf32>
      %155 = tpu.reciprocal %154 : vector<8x1xf32> -> vector<8x1xf32>
      %156 = vector.extract_strided_slice %152 {offsets = [0, 0], sizes = [8, 8], strides = [1, 1]} : vector<8x32xf32> to vector<8x8xf32>
      %157 = vector.broadcast %155 : vector<8x1xf32> to vector<8x8xf32>
      %158 = arith.mulf %156, %157 : vector<8x8xf32>
      %c1_86 = arith.constant 1 : index
      %c0_87 = arith.constant 0 : index
      %c0_88 = arith.constant 0 : index
      %159 = vector.load %arg10[%c1_86, %c0_87, %c0_88] : memref<4x8x1xf32, #tpu.memory_space<vmem>>, vector<1x8x1xf32>
      %160 = vector.shape_cast %159 : vector<1x8x1xf32> to vector<8x1xf32>
      %161 = tpu.reciprocal %160 : vector<8x1xf32> -> vector<8x1xf32>
      %162 = vector.extract_strided_slice %152 {offsets = [0, 8], sizes = [8, 8], strides = [1, 1]} : vector<8x32xf32> to vector<8x8xf32>
      %163 = vector.broadcast %161 : vector<8x1xf32> to vector<8x8xf32>
      %164 = arith.mulf %162, %163 : vector<8x8xf32>
      %c2_89 = arith.constant 2 : index
      %c0_90 = arith.constant 0 : index
      %c0_91 = arith.constant 0 : index
      %165 = vector.load %arg10[%c2_89, %c0_90, %c0_91] : memref<4x8x1xf32, #tpu.memory_space<vmem>>, vector<1x8x1xf32>
      %166 = vector.shape_cast %165 : vector<1x8x1xf32> to vector<8x1xf32>
      %167 = tpu.reciprocal %166 : vector<8x1xf32> -> vector<8x1xf32>
      %168 = vector.extract_strided_slice %152 {offsets = [0, 16], sizes = [8, 8], strides = [1, 1]} : vector<8x32xf32> to vector<8x8xf32>
      %169 = vector.broadcast %167 : vector<8x1xf32> to vector<8x8xf32>
      %170 = arith.mulf %168, %169 : vector<8x8xf32>
      %c3_92 = arith.constant 3 : index
      %c0_93 = arith.constant 0 : index
      %c0_94 = arith.constant 0 : index
      %171 = vector.load %arg10[%c3_92, %c0_93, %c0_94] : memref<4x8x1xf32, #tpu.memory_space<vmem>>, vector<1x8x1xf32>
      %172 = vector.shape_cast %171 : vector<1x8x1xf32> to vector<8x1xf32>
      %173 = tpu.reciprocal %172 : vector<8x1xf32> -> vector<8x1xf32>
      %174 = vector.extract_strided_slice %152 {offsets = [0, 24], sizes = [8, 8], strides = [1, 1]} : vector<8x32xf32> to vector<8x8xf32>
      %175 = vector.broadcast %173 : vector<8x1xf32> to vector<8x8xf32>
      %176 = arith.mulf %174, %175 : vector<8x8xf32>
      %177 = tpu.concatenate %158, %164, %170, %176 in 1 : vector<8x8xf32>, vector<8x8xf32>, vector<8x8xf32>, vector<8x8xf32> -> vector<8x32xf32>
      %c0_95 = arith.constant 0 : index
      %c0_96 = arith.constant 0 : index
      %c0_97 = arith.constant 0 : index
      %178 = vector.load %arg7[%c0_95, %c0_96, %c0_97] : memref<1x8x32xf32, #tpu.memory_space<vmem>>, vector<1x8x32xf32>
      %179 = vector.shape_cast %178 : vector<1x8x32xf32> to vector<8x32xf32>
      %180 = vector.shape_cast %177 : vector<8x32xf32> to vector<1x8x32xf32>
      tpu.vector_store %arg7[%c0_95, %c0_96, %c0_97], %180 {strides = array<i32>} : memref<1x8x32xf32, #tpu.memory_space<vmem>>, vector<1x8x32xf32>,
    } else {
    }
    return
  }
  func.func @transform_0(%arg0: i32, %arg1: i32, %arg2: i32) -> (i32, i32, i32) {
    %c0_i32 = arith.constant 0 : i32
    %c0_i32_0 = arith.constant 0 : i32
    return %arg0, %arg1, %c0_i32 : i32, i32, i32
  }
  func.func @transform_1(%arg0: i32, %arg1: i32, %arg2: i32) -> (i32, i32, i32) {
    %c0_i32 = arith.constant 0 : i32
    %c0_i32_0 = arith.constant 0 : i32
    return %arg0, %arg2, %c0_i32 : i32, i32, i32
  }
  func.func @transform_2(%arg0: i32, %arg1: i32, %arg2: i32) -> (i32, i32, i32) {
    %c0_i32 = arith.constant 0 : i32
    %c0_i32_0 = arith.constant 0 : i32
    return %arg0, %arg2, %c0_i32 : i32, i32, i32
  }
  func.func @transform_3(%arg0: i32, %arg1: i32, %arg2: i32) -> (i32, i32, i32) {
    %c0_i32 = arith.constant 0 : i32
    return %arg0, %arg1, %arg2 : i32, i32, i32
  }
  func.func @transform_4(%arg0: i32, %arg1: i32, %arg2: i32) -> (i32, i32, i32) {
    %c0_i32 = arith.constant 0 : i32
    %c0_i32_0 = arith.constant 0 : i32
    return %arg0, %arg1, %c0_i32 : i32, i32, i32
  }
}

</mosaic_0001>

<llo_original>
// kernel: tpu_custom_call.1
$region0: #{tpu_custom_call.1}
  #allocation0 [shape = 'u32[]', space=smem, size = 0x4, offset = 0x4, fixed_abs, tag = 'smem constant byte address 0x4 - core index']
  #allocation1 [shape = 'u32[144,128]{1,0:T(1,128)}', space=vmem, size = 0x12000, scoped, tag = 'internal scratch']
  #allocation2 [shape = 'f32[8,32]{1,0:T(8,128)}', space=vmem, size = 0x1000, scoped, tag = 'scratch operand']
  #allocation3 [shape = 'f32[4,8,1]{2,1,0:T(8,128)}', space=vmem, size = 0x4000, scoped, tag = 'scratch operand']
  #allocation4 [shape = 'f32[4,8,1]{2,1,0:T(8,128)}', space=vmem, size = 0x4000, scoped, tag = 'scratch operand']
  %s0 = inlined_call_operand.hbm [shape: f32[2,8,32], index: 0, kind: input, shape index: {}]
  %s1 = inlined_call_operand.hbm [shape: f32[2,8,32], index: 1, kind: input, shape index: {}]
  %s2 = inlined_call_operand.hbm [shape: f32[2,8,32], index: 2, kind: input, shape index: {}]
  %s3 = inlined_call_operand.vmem [shape: s8[2,8,8], index: 3, kind: input, shape index: {}]
  %s4 = inlined_call_operand.hbm [shape: f32[2,8,32], index: 4, kind: output, shape index: {}]
  %s5 = sld [smem:[#allocation0]]
  $region69: #{tpu_custom_call.1} parent=0
    _
  %s7 = ssub.s32 1, %s5
  %s8 = scalar_select 0, %s7, %s5
  $region1: #{tpu_custom_call.1} parent=0
    #allocation5 [shape = 'u8[8192]{0}', space=vmem, size = 0x2000, scoped, tag = 'input window, operand 0']
    #allocation6 [shape = 's32[2]{0}', space=sflag, size = 0x8, scoped, tag = 'scoped memory for tpu_custom_call.1']
    #allocation7 [shape = 's32[2]{0}', space=sflag, size = 0x8, scoped, tag = 'scoped memory for tpu_custom_call.1']
    #allocation8 [shape = 'u8[8192]{0}', space=vmem, size = 0x2000, scoped, tag = 'input window, operand 1']
    #allocation9 [shape = 's32[2]{0}', space=sflag, size = 0x8, scoped, tag = 'scoped memory for tpu_custom_call.1']
    #allocation10 [shape = 'u8[8192]{0}', space=vmem, size = 0x2000, scoped, tag = 'input window, operand 2']
    #allocation11 [shape = 'u8[8192]{0}', space=vmem, size = 0x2000, scoped, tag = 'output window, operand 0']
    %9 = vsyncpa [#allocation6], 0
    %s10 = scalar_lea.sflag [#allocation6], 1
    %11 = vsyncpa %s10, 0
    %12 = vsyncpa [#allocation9], 0
    %s13 = scalar_lea.sflag [#allocation9], 1
    %14 = vsyncpa %s13, 0
    %15 = vsyncpa [#allocation7], 0
    %s16 = scalar_lea.sflag [#allocation7], 1
    %17 = vsyncpa %s16, 0
    loop: start=0, step=1, limit=4
    $region2: #{tpu_custom_call.1} parent=1 // loop_pre_header
      _
    $region3: #{tpu_custom_call.1} parent=1 // loop_header
      %s19 = sphi 0, %s23
      %p20 = scmp.ge.s32.totalorder %s19, 4
      %s26 = sphi 0, %s45
      %s27 = sphi 0, %s41
      %s28 = sphi 0, %s37
      %s29 = sphi 0, %s26
      %s30 = sphi 0, %s27
      %s31 = sphi 0, %s28
      %s32 = sphi 0, %s29
      %s33 = sphi 0, %s30
      %s34 = sphi 0, %s31
      %s50 = sphi 0, %s52
      %s53 = sphi 0, %s50
      %s54 = sphi 0, %s53
      %s70 = sphi 0, %s54
      %s78 = sphi 0, %s80
      %s81 = sphi 0, %s78
      %s82 = sphi 0, %s81
      %s98 = sphi 0, %s82
      %s106 = sphi 0, %s108
      %s109 = sphi 0, %s106
      %s110 = sphi 0, %s109
      %s126 = sphi 0, %s110
      %s136 = sphi 0, %s138
      %s139 = sphi 0, %s136
      %s140 = sphi 0, %s139
      %s156 = sphi 0, %s140
      %s164 = sphi 0, %s166
      %s167 = sphi 0, %s164
      %s168 = sphi 0, %s167
      %s184 = sphi 0, %s168
    $region4: #{tpu_custom_call.1} parent=1 // loop_header_branch
      %22 = sbr.rel (%p20) target = $region8
    $region5: #{tpu_custom_call.1} parent=1 // loop_body
      %s24 = ssub.s32 %s19, 1
      %s25 = ssub.s32 %s19, 2
      %s35 = sadd.s32 1, %s28
      %p36 = scmp.ge.s32.totalorder %s35, 1
      %s37 = scalar_select %p36, 0, %s35
      %s38 = sadd.s32 1, %s27
      %s39 = scalar_select %p36, %s38, %s27
      %p40 = scmp.ge.s32.totalorder %s39, 1
      %s41 = scalar_select %p40, 0, %s39
      %s42 = sadd.s32 1, %s26
      %s43 = scalar_select %p40, %s42, %s26
      %p44 = scmp.ge.s32.totalorder %s43, 2
      %s45 = scalar_select %p44, 0, %s43
      %s46 = ssub.s32 %s26, %s45
      %s47 = ssub.s32 %s27, %s41
      %s48 = sor.u32 %s46, %s47
      %p49 = scmp.eq.s32.totalorder %s48, 0
      %s51 = sadd.s32 %s50, 1
      %s52 = scalar_select %p49, %s50, %s51
      %p55 = pneg %p49
      %p56 = scmp.eq.s32.totalorder %s19, 1
      %p57 = por %p55, %p56
      %p58 = scmp.ne.s32.totalorder %s50, %s53
      %p59 = scmp.eq.s32.totalorder %s19, 0
      %p60 = por %p58, %p59
      %p61 = scmp.ne.s32.totalorder %s50, %s53
      %p62 = scmp.eq.s32.totalorder %s24, 1
      %p63 = por %p61, %p62
      %p64 = scmp.ne.s32.totalorder %s53, %s54
      %p65 = scmp.eq.s32.totalorder %s24, 0
      %p66 = por %p64, %p65
      %p67 = scmp.ne.s32.totalorder %s53, %s54
      %p68 = scmp.eq.s32.totalorder %s25, 1
      %p69 = por %p67, %p68
      %p71 = scmp.ne.s32.totalorder %s54, %s70
      %p72 = scmp.eq.s32.totalorder %s25, 0
      %p73 = por %p71, %p72
      %s74 = ssub.s32 %s26, %s45
      %s75 = ssub.s32 %s28, %s37
      %s76 = sor.u32 %s74, %s75
      %p77 = scmp.eq.s32.totalorder %s76, 0
      %s79 = sadd.s32 %s78, 1
      %s80 = scalar_select %p77, %s78, %s79
      %p83 = pneg %p77
      %p84 = scmp.eq.s32.totalorder %s19, 1
      %p85 = por %p83, %p84
      %p86 = scmp.ne.s32.totalorder %s78, %s81
      %p87 = scmp.eq.s32.totalorder %s19, 0
      %p88 = por %p86, %p87
      %p89 = scmp.ne.s32.totalorder %s78, %s81
      %p90 = scmp.eq.s32.totalorder %s24, 1
      %p91 = por %p89, %p90
      %p92 = scmp.ne.s32.totalorder %s81, %s82
      %p93 = scmp.eq.s32.totalorder %s24, 0
      %p94 = por %p92, %p93
      %p95 = scmp.ne.s32.totalorder %s81, %s82
      %p96 = scmp.eq.s32.totalorder %s25, 1
      %p97 = por %p95, %p96
      %p99 = scmp.ne.s32.totalorder %s82, %s98
      %p100 = scmp.eq.s32.totalorder %s25, 0
      %p101 = por %p99, %p100
      %s102 = ssub.s32 %s26, %s45
      %s103 = ssub.s32 %s28, %s37
      %s104 = sor.u32 %s102, %s103
      %p105 = scmp.eq.s32.totalorder %s104, 0
      %s107 = sadd.s32 %s106, 1
      %s108 = scalar_select %p105, %s106, %s107
      %p111 = pneg %p105
      %p112 = scmp.eq.s32.totalorder %s19, 1
      %p113 = por %p111, %p112
      %p114 = scmp.ne.s32.totalorder %s106, %s109
      %p115 = scmp.eq.s32.totalorder %s19, 0
      %p116 = por %p114, %p115
      %p117 = scmp.ne.s32.totalorder %s106, %s109
      %p118 = scmp.eq.s32.totalorder %s24, 1
      %p119 = por %p117, %p118
      %p120 = scmp.ne.s32.totalorder %s109, %s110
      %p121 = scmp.eq.s32.totalorder %s24, 0
      %p122 = por %p120, %p121
      %p123 = scmp.ne.s32.totalorder %s109, %s110
      %p124 = scmp.eq.s32.totalorder %s25, 1
      %p125 = por %p123, %p124
      %p127 = scmp.ne.s32.totalorder %s110, %s126
      %p128 = scmp.eq.s32.totalorder %s25, 0
      %p129 = por %p127, %p128
      %s130 = ssub.s32 %s26, %s45
      %s131 = ssub.s32 %s27, %s41
      %s132 = sor.u32 %s130, %s131
      %s133 = ssub.s32 %s28, %s37
      %s134 = sor.u32 %s132, %s133
      %p135 = scmp.eq.s32.totalorder %s134, 0
      %s137 = sadd.s32 %s136, 1
      %s138 = scalar_select %p135, %s136, %s137
      %p141 = pneg %p135
      %p142 = scmp.eq.s32.totalorder %s19, 1
      %p143 = por %p141, %p142
      %p144 = scmp.ne.s32.totalorder %s136, %s139
      %p145 = scmp.eq.s32.totalorder %s19, 0
      %p146 = por %p144, %p145
      %p147 = scmp.ne.s32.totalorder %s136, %s139
      %p148 = scmp.eq.s32.totalorder %s24, 1
      %p149 = por %p147, %p148
      %p150 = scmp.ne.s32.totalorder %s139, %s140
      %p151 = scmp.eq.s32.totalorder %s24, 0
      %p152 = por %p150, %p151
      %p153 = scmp.ne.s32.totalorder %s139, %s140
      %p154 = scmp.eq.s32.totalorder %s25, 1
      %p155 = por %p153, %p154
      %p157 = scmp.ne.s32.totalorder %s140, %s156
      %p158 = scmp.eq.s32.totalorder %s25, 0
      %p159 = por %p157, %p158
      %s160 = ssub.s32 %s26, %s45
      %s161 = ssub.s32 %s27, %s41
      %s162 = sor.u32 %s160, %s161
      %p163 = scmp.eq.s32.totalorder %s162, 0
      %s165 = sadd.s32 %s164, 1
      %s166 = scalar_select %p163, %s164, %s165
      %p169 = pneg %p163
      %p170 = scmp.eq.s32.totalorder %s19, 1
      %p171 = por %p169, %p170
      %p172 = scmp.ne.s32.totalorder %s164, %s167
      %p173 = scmp.eq.s32.totalorder %s19, 0
      %p174 = por %p172, %p173
      %p175 = scmp.ne.s32.totalorder %s164, %s167
      %p176 = scmp.eq.s32.totalorder %s24, 1
      %p177 = por %p175, %p176
      %p178 = scmp.ne.s32.totalorder %s167, %s168
      %p179 = scmp.eq.s32.totalorder %s24, 0
      %p180 = por %p178, %p179
      %p181 = scmp.ne.s32.totalorder %s167, %s168
      %p182 = scmp.eq.s32.totalorder %s25, 1
      %p183 = por %p181, %p182
      %p185 = scmp.ne.s32.totalorder %s168, %s184
      %p186 = scmp.eq.s32.totalorder %s25, 0
      %p187 = por %p185, %p186
      %p188 = scmp.le.s32.totalorder 1, %s19
      %p189 = scmp.lt.s32.totalorder %s19, 3
      %p190 = pnand %p188, %p189
      %p191 = pneg %p190
      // Predicated region
      $region9: #{tpu_custom_call.1} parent=5 // pred_check
        _
      $region10: #{tpu_custom_call.1} parent=5 // pred_check_branch
        %193 = sbr.rel (%p190) target = $region12
      $region11: #{tpu_custom_call.1} parent=5 // pred_region
        %s194 = ssub.s32 %s19, 1
      $region12: #{tpu_custom_call.1} parent=5 // pred_fallthru
        _
      %p195 = scmp.lt.s32.totalorder %s19, 2
      // Predicated region
      $region13: #{tpu_custom_call.1} parent=5 // pred_check
        %p196 = pneg %p195
      $region14: #{tpu_custom_call.1} parent=5 // pred_check_branch
        %198 = sbr.rel (%p196) target = $region16
      $region15: #{tpu_custom_call.1} parent=5 // pred_region
        // Predicated region
        $region17: #{tpu_custom_call.1} parent=15 // pred_check
          %p199 = pneg %p60
        $region18: #{tpu_custom_call.1} parent=15 // pred_check_branch
          %201 = sbr.rel (%p199) target = $region20
        $region19: #{tpu_custom_call.1} parent=15 // pred_region
          %s202 = sand.u32 %s50, 1
          %s203 = scalar_lea.sflag [#allocation6], %s202
          %s204 = sand.u32 %s50, 1
          %s205 = smul.addr %s204, 8
          %s206 = scalar_lea.vmem [#allocation5], %s205
          %s208 = ssub.s32 128, 128
          %209 = vsyncadd %s203, %s208
          %s210 = sadd.s32 %s27, %s26
          %s211 = smul.addr %s210, 128
          %s212 = scalar_lea.hbm %s0, %s211
          %s214 = sshll.u32 %s206, 4
          %s215 = int_to_ptr.vmem [resolvable:$true] %s214
          %217 = dma.hbm_to_vmem [thread:$0]  %s212, 128, %s215, %s203
        $region20: #{tpu_custom_call.1} parent=15 // pred_fallthru
          _
        // Predicated region
        $region21: #{tpu_custom_call.1} parent=15 // pred_check
          %p218 = pneg %p88
        $region22: #{tpu_custom_call.1} parent=15 // pred_check_branch
          %220 = sbr.rel (%p218) target = $region24
        $region23: #{tpu_custom_call.1} parent=15 // pred_region
          %s221 = sand.u32 %s19, 1
          %s222 = scalar_lea.sflag [#allocation9], %s221
          %s223 = sand.u32 %s78, 1
          %s224 = smul.addr %s223, 8
          %s225 = scalar_lea.vmem [#allocation8], %s224
          %s227 = ssub.s32 128, 128
          %228 = vsyncadd %s222, %s227
          %s229 = sadd.s32 %s28, %s26
          %s230 = smul.addr %s229, 128
          %s231 = scalar_lea.hbm %s1, %s230
          %s233 = sshll.u32 %s225, 4
          %s234 = int_to_ptr.vmem [resolvable:$true] %s233
          %236 = dma.hbm_to_vmem [thread:$0]  %s231, 128, %s234, %s222
        $region24: #{tpu_custom_call.1} parent=15 // pred_fallthru
          _
        // Predicated region
        $region25: #{tpu_custom_call.1} parent=15 // pred_check
          %p237 = pneg %p116
        $region26: #{tpu_custom_call.1} parent=15 // pred_check_branch
          %239 = sbr.rel (%p237) target = $region28
        $region27: #{tpu_custom_call.1} parent=15 // pred_region
          %s240 = sand.u32 %s19, 1
          %s241 = scalar_lea.sflag [#allocation9], %s240
          %s242 = sand.u32 %s106, 1
          %s243 = smul.addr %s242, 8
          %s244 = scalar_lea.vmem [#allocation10], %s243
          %s246 = ssub.s32 128, 128
          %247 = vsyncadd %s241, %s246
          %s248 = sadd.s32 %s28, %s26
          %s249 = smul.addr %s248, 128
          %s250 = scalar_lea.hbm %s2, %s249
          %s252 = sshll.u32 %s244, 4
          %s253 = int_to_ptr.vmem [resolvable:$true] %s252
          %255 = dma.hbm_to_vmem [thread:$0]  %s250, 128, %s253, %s241
        $region28: #{tpu_custom_call.1} parent=15 // pred_fallthru
          _
        // Predicated region
        $region29: #{tpu_custom_call.1} parent=15 // pred_check
          %p256 = pneg %p146
        $region30: #{tpu_custom_call.1} parent=15 // pred_check_branch
          %258 = sbr.rel (%p256) target = $region32
        $region31: #{tpu_custom_call.1} parent=15 // pred_region
          %p259 = scmp.lt.s32.totalorder %s26, 1
          %s260 = scalar_select %p259, %s26, 1
          %p261 = scmp.lt.s32.totalorder %s27, 0
          %s262 = scalar_select %p261, %s27, 0
          %p263 = scmp.lt.s32.totalorder %s28, 0
          %s264 = scalar_select %p263, %s28, 0
          %s265 = sadd.s32 %s264, %s262
          %s266 = sadd.s32 %s265, %s260
          %s267 = smul.addr %s266, 2
          %s268 = scalar_lea.vmem %s3, %s267
        $region32: #{tpu_custom_call.1} parent=15 // pred_fallthru
          _
      $region16: #{tpu_custom_call.1} parent=5 // pred_fallthru
        _
      %p269 = scmp.le.s32.totalorder 1, %s19
      %p270 = scmp.lt.s32.totalorder %s19, 3
      %p271 = pnand %p269, %p270
      %p272 = pneg %p271
      // Predicated region
      $region33: #{tpu_custom_call.1} parent=5 // pred_check
        _
      $region34: #{tpu_custom_call.1} parent=5 // pred_check_branch
        %274 = sbr.rel (%p271) target = $region36
      $region35: #{tpu_custom_call.1} parent=5 // pred_region
        %s275 = ssub.s32 %s19, 1
        %s276 = sand.u32 %s53, 1
        %s277 = scalar_lea.sflag [#allocation6], %s276
        %s278 = sand.u32 %s53, 1
        %s279 = smul.addr %s278, 8
        %s280 = scalar_lea.vmem [#allocation5], %s279
        // Predicated region
        $region37: #{tpu_custom_call.1} parent=35 // pred_check
          %p281 = pneg %p66
        $region38: #{tpu_custom_call.1} parent=35 // pred_check_branch
          %283 = sbr.rel (%p281) target = $region40
        $region39: #{tpu_custom_call.1} parent=35 // pred_region
          %284 = dma.done %s277, 128
        $region40: #{tpu_custom_call.1} parent=35 // pred_fallthru
          _
        %s285 = sand.u32 %s24, 1
        %s286 = scalar_lea.sflag [#allocation9], %s285
        %s287 = sand.u32 %s81, 1
        %s288 = smul.addr %s287, 8
        %s289 = scalar_lea.vmem [#allocation8], %s288
        // Predicated region
        $region41: #{tpu_custom_call.1} parent=35 // pred_check
          %p290 = pneg %p94
        $region42: #{tpu_custom_call.1} parent=35 // pred_check_branch
          %292 = sbr.rel (%p290) target = $region44
        $region43: #{tpu_custom_call.1} parent=35 // pred_region
          %293 = dma.done %s286, 128
        $region44: #{tpu_custom_call.1} parent=35 // pred_fallthru
          _
        %s294 = sand.u32 %s24, 1
        %s295 = scalar_lea.sflag [#allocation9], %s294
        %s296 = sand.u32 %s109, 1
        %s297 = smul.addr %s296, 8
        %s298 = scalar_lea.vmem [#allocation10], %s297
        // Predicated region
        $region45: #{tpu_custom_call.1} parent=35 // pred_check
          %p299 = pneg %p122
        $region46: #{tpu_custom_call.1} parent=35 // pred_check_branch
          %301 = sbr.rel (%p299) target = $region48
        $region47: #{tpu_custom_call.1} parent=35 // pred_region
          %302 = dma.done %s295, 128
        $region48: #{tpu_custom_call.1} parent=35 // pred_fallthru
          _
        %s303 = sand.u32 %s53, 1
        %s304 = scalar_lea.sflag [#allocation6], %s303
        %s305 = sand.u32 %s53, 1
        %s306 = smul.addr %s305, 8
        %s307 = scalar_lea.vmem [#allocation5], %s306
        %p308 = pneg %p66
        %p309 = pneg %p63
        %s310 = sand.u32 %s24, 1
        %s311 = scalar_lea.sflag [#allocation9], %s310
        %s312 = sand.u32 %s81, 1
        %s313 = smul.addr %s312, 8
        %s314 = scalar_lea.vmem [#allocation8], %s313
        %p315 = pneg %p94
        %p316 = pneg %p91
        %s317 = sand.u32 %s24, 1
        %s318 = scalar_lea.sflag [#allocation9], %s317
        %s319 = sand.u32 %s109, 1
        %s320 = smul.addr %s319, 8
        %s321 = scalar_lea.vmem [#allocation10], %s320
        %p322 = pneg %p122
        %p323 = pneg %p119
        %p324 = scmp.lt.s32.totalorder %s29, 1
        %s325 = scalar_select %p324, %s29, 1
        %p326 = scmp.lt.s32.totalorder %s30, 0
        %s327 = scalar_select %p326, %s30, 0
        %p328 = scmp.lt.s32.totalorder %s31, 0
        %s329 = scalar_select %p328, %s31, 0
        %s330 = sadd.s32 %s329, %s327
        %s331 = sadd.s32 %s330, %s325
        %s332 = smul.addr %s331, 2
        %s333 = scalar_lea.vmem %s3, %s332
        %p334 = pneg %p152
        %p335 = pneg %p149
        %p336 = pneg %p180
        %p337 = pneg %p177
        %s338 = sand.u32 %s167, 1
        %s339 = scalar_lea.sflag [#allocation7], %s338
        %s340 = sand.u32 %s167, 1
        %s341 = smul.addr %s340, 8
        %s342 = scalar_lea.vmem [#allocation11], %s341
        %p343 = scmp.lt.s32.totalorder %s29, 1
        %s344 = scalar_select %p343, %s29, 1
        %p345 = scmp.lt.s32.totalorder %s30, 0
        %s346 = scalar_select %p345, %s30, 0
        %p347 = scmp.lt.s32.totalorder %s31, 0
        %s348 = scalar_select %p347, %s31, 0
        %s349 = sadd.s32 %s348, %s346
        %s350 = sadd.s32 %s349, %s344
        %s351 = smul.addr %s350, 2
        %s352 = scalar_lea.vmem %s3, %s351
        %p353 = scmp.eq.s32.totalorder %s31, 0
        // Predicated region
        $region49: #{tpu_custom_call.1} parent=35 // pred_check
          %p354 = pneg %p353
        $region50: #{tpu_custom_call.1} parent=35 // pred_check_branch
          %356 = sbr.rel (%p354) target = $region52
        $region51: #{tpu_custom_call.1} parent=35 // pred_region
          %vm357 = vcmask 7168
          %358 = vst.msk [vmem:[#allocation3] sm:$0xff] %vm357, -inf
          %359 = vst.msk [vmem:[#allocation3 + $0x8] sm:$0xff] %vm357, -inf
          %360 = vst.msk [vmem:[#allocation3 + $0x10] sm:$0xff] %vm357, -inf
          %361 = vst.msk [vmem:[#allocation3 + $0x18] sm:$0xff] %vm357, -inf
          %362 = vst.msk [vmem:[#allocation4] sm:$0xff] %vm357, 0.0
          %363 = vst.msk [vmem:[#allocation4 + $0x8] sm:$0xff] %vm357, 0.0
          %364 = vst.msk [vmem:[#allocation4 + $0x10] sm:$0xff] %vm357, 0.0
          %365 = vst.msk [vmem:[#allocation4 + $0x18] sm:$0xff] %vm357, 0.0
          %vm366 = vcmask 261120
          %367 = vst.msk [vmem:[#allocation2] sm:$0xff] %vm366, 0.0
        $region52: #{tpu_custom_call.1} parent=35 // pred_fallthru
          _
        %v368 = vld [vmem:[%s280] sm:$0xff]
        %v369 = vmul.f32 %v368, 0.35355338
        %v370 = vld [vmem:[%s289] sm:$0xff]
        %v371 = vld [vmem:[%s298] sm:$0xff]
        %v372 = vld [vmem:[%s352] sm:$0x3]
        %v373 = vunpack.c.0.s8 %v372
        %v374 = vcvt.s32.f32 %v373
        %v375 = vmul.f32 %v374, -1e+09
        %v376 = vld [vmem:[#allocation2] sm:$0xff]
        %vm377 = vcmask 64512
        %v379 = vsel %vm377, %v369, 0
        %v382 = vsel %vm377, %v370, 0
        %384 = vmatprep.subr.mxu0 0.0
        %385 = vmatpush1.xpose.msra.mxu0 0.0
        %386 = vmatprep.subr.mxu0 0.0
        %387 = vmatpush1.xpose.msra.mxu0 0.0
        %388 = vmatprep.subr.mxu0 0.0
        %389 = vmatpush1.xpose.msra.mxu0 0.0
        %390 = vmatprep.subr.mxu0 0.0
        %391 = vmatpush1.xpose.msra.mxu0 0.0
        %392 = vmatprep.subr.mxu0 0.0
        %393 = vmatpush1.xpose.msra.mxu0 0.0
        %394 = vmatprep.subr.mxu0 0.0
        %395 = vmatpush1.xpose.msra.mxu0 0.0
        %396 = vmatprep.subr.mxu0 0.0
        %397 = vmatpush1.xpose.msra.mxu0 0.0
        %398 = vmatprep.subr.mxu0 0.0
        %399 = vmatpush1.xpose.msra.mxu0 0.0
        %400 = vmatprep.subr.mxu0 0.0
        %401 = vmatpush1.xpose.msra.mxu0 0.0
        %402 = vmatprep.subr.mxu0 0.0
        %403 = vmatpush1.xpose.msra.mxu0 0.0
        %404 = vmatprep.subr.mxu0 0.0
        %405 = vmatpush1.xpose.msra.mxu0 0.0
        %406 = vmatprep.subr.mxu0 0.0
        %407 = vmatpush1.xpose.msra.mxu0 0.0
        %408 = vmatprep.subr.mxu0 0.0
        %409 = vmatpush1.xpose.msra.mxu0 0.0
        %410 = vmatprep.subr.mxu0 0.0
        %411 = vmatpush1.xpose.msra.mxu0 0.0
        %412 = vmatprep.subr.mxu0 0.0
        %413 = vmatpush1.xpose.msra.mxu0 0.0
        %414 = vmatprep.subr.mxu0 0.0
        %415 = vmatpush1.xpose.msra.mxu0 %v382
        %416 = vmatprep.subr.mxu0 0.0
        %417 = vmatpush2.xpose.msra.mxu0 0.0
        %418 = vmatprep.subr.mxu0 0.0
        %419 = vmatpush2.xpose.msra.mxu0 0.0
        %420 = vmatprep.subr.mxu0 0.0
        %421 = vmatpush2.xpose.msra.mxu0 0.0
        %422 = vmatprep.subr.mxu0 0.0
        %423 = vmatpush2.xpose.msra.mxu0 0.0
        %424 = vmatprep.subr.mxu0 0.0
        %425 = vmatpush2.xpose.msra.mxu0 0.0
        %426 = vmatprep.subr.mxu0 0.0
        %427 = vmatpush2.xpose.msra.mxu0 0.0
        %428 = vmatprep.subr.mxu0 0.0
        %429 = vmatpush2.xpose.msra.mxu0 0.0
        %430 = vmatprep.subr.mxu0 0.0
        %431 = vmatpush2.xpose.msra.mxu0 0.0
        %432 = vmatprep.subr.mxu0 0.0
        %433 = vmatpush2.xpose.msra.mxu0 0.0
        %434 = vmatprep.subr.mxu0 0.0
        %435 = vmatpush2.xpose.msra.mxu0 0.0
        %436 = vmatprep.subr.mxu0 0.0
        %437 = vmatpush2.xpose.msra.mxu0 0.0
        %438 = vmatprep.subr.mxu0 0.0
        %439 = vmatpush2.xpose.msra.mxu0 0.0
        %440 = vmatprep.subr.mxu0 0.0
        %441 = vmatpush2.xpose.msra.mxu0 0.0
        %442 = vmatprep.subr.mxu0 0.0
        %443 = vmatpush2.xpose.msra.mxu0 0.0
        %444 = vmatprep.subr.mxu0 0.0
        %445 = vmatpush2.xpose.msra.mxu0 0.0
        %446 = vmatprep.subr.mxu0 0.0
        %447 = vmatpush2.xpose.msra.mxu0 0.0
        %448 = vmatprep.mubr.f32.mxu0 0.0
        %449 = vmatmul.mubr.f32.gmra.mxu0 %v379
        %v450 = vpop.f32.mrf.mxu0
        %v451 = vadd.f32 %v375, %v450
        %v452 = vpop.f32.mrf.mxu0
        %453 = vdwg.mxu0
        %v454 = vld [vmem:[#allocation3] sm:$0xff]
        %v455 = vsel %vm377, %v451, -inf
        %456 = vmax.xlane.f32.xlu0 %v455
        %v457 = vpop.xlane.xlu0 %456
        %v458 = vmax.f32 %v454, %v457
        %v459 = vsub.f32 %v454, %v458
        %v460 = vmul.f32 %v459, 1.442695
        %v461 = vpow.pop %v460
        %463 = vset.pattern.permute.xlu0 0
        %464 = vperm.xlu0 %463, %v458
        %v465 = vpop.permute.xlu0 %464
        %v467 = vsub.f32 %v451, %v465
        %v468 = vmul.f32 %v467, 1.442695
        %v469 = vpow.pop %v468
        %v470 = vld [vmem:[#allocation4] sm:$0xff]
        %v471 = vmul.f32 %v461, %v470
        %v472 = vsel %vm377, %v469, 0.0
        %473 = vadd.xlane.f32.xlu0 %v472
        %v474 = vpop.xlane.xlu0 %473
        %v475 = vadd.f32 %v471, %v474
        %vm476 = vcmask 7168
        %477 = vst.msk [vmem:[#allocation4] sm:$0xff] %vm476, %v475
        %478 = vst.msk [vmem:[#allocation3] sm:$0xff] %vm476, %v458
        %v480 = vsel %vm377, %v469, 0
        %482 = vmatprep.subr.mxu0 0.0
        %483 = vmatpush1.msra.mxu0 0.0
        %484 = vmatprep.subr.mxu0 0.0
        %485 = vmatpush1.msra.mxu0 0.0
        %486 = vmatprep.subr.mxu0 0.0
        %487 = vmatpush1.msra.mxu0 0.0
        %488 = vmatprep.subr.mxu0 0.0
        %489 = vmatpush1.msra.mxu0 0.0
        %490 = vmatprep.subr.mxu0 0.0
        %491 = vmatpush1.msra.mxu0 0.0
        %492 = vmatprep.subr.mxu0 0.0
        %493 = vmatpush1.msra.mxu0 0.0
        %494 = vmatprep.subr.mxu0 0.0
        %495 = vmatpush1.msra.mxu0 0.0
        %496 = vmatprep.subr.mxu0 0.0
        %497 = vmatpush1.msra.mxu0 0.0
        %498 = vmatprep.subr.mxu0 0.0
        %499 = vmatpush1.msra.mxu0 0.0
        %500 = vmatprep.subr.mxu0 0.0
        %501 = vmatpush1.msra.mxu0 0.0
        %502 = vmatprep.subr.mxu0 0.0
        %503 = vmatpush1.msra.mxu0 0.0
        %504 = vmatprep.subr.mxu0 0.0
        %505 = vmatpush1.msra.mxu0 0.0
        %506 = vmatprep.subr.mxu0 0.0
        %507 = vmatpush1.msra.mxu0 0.0
        %508 = vmatprep.subr.mxu0 0.0
        %509 = vmatpush1.msra.mxu0 0.0
        %510 = vmatprep.subr.mxu0 0.0
        %511 = vmatpush1.msra.mxu0 0.0
        %512 = vmatprep.subr.mxu0 0.0
        %513 = vmatpush1.msra.mxu0 %v371
        %514 = vmatprep.subr.mxu0 0.0
        %515 = vmatpush2.msra.mxu0 0.0
        %516 = vmatprep.subr.mxu0 0.0
        %517 = vmatpush2.msra.mxu0 0.0
        %518 = vmatprep.subr.mxu0 0.0
        %519 = vmatpush2.msra.mxu0 0.0
        %520 = vmatprep.subr.mxu0 0.0
        %521 = vmatpush2.msra.mxu0 0.0
        %522 = vmatprep.subr.mxu0 0.0
        %523 = vmatpush2.msra.mxu0 0.0
        %524 = vmatprep.subr.mxu0 0.0
        %525 = vmatpush2.msra.mxu0 0.0
        %526 = vmatprep.subr.mxu0 0.0
        %527 = vmatpush2.msra.mxu0 0.0
        %528 = vmatprep.subr.mxu0 0.0
        %529 = vmatpush2.msra.mxu0 0.0
        %530 = vmatprep.subr.mxu0 0.0
        %531 = vmatpush2.msra.mxu0 0.0
        %532 = vmatprep.subr.mxu0 0.0
        %533 = vmatpush2.msra.mxu0 0.0
        %534 = vmatprep.subr.mxu0 0.0
        %535 = vmatpush2.msra.mxu0 0.0
        %536 = vmatprep.subr.mxu0 0.0
        %537 = vmatpush2.msra.mxu0 0.0
        %538 = vmatprep.subr.mxu0 0.0
        %539 = vmatpush2.msra.mxu0 0.0
        %540 = vmatprep.subr.mxu0 0.0
        %541 = vmatpush2.msra.mxu0 0.0
        %542 = vmatprep.subr.mxu0 0.0
        %543 = vmatpush2.msra.mxu0 0.0
        %544 = vmatprep.subr.mxu0 0.0
        %545 = vmatpush2.msra.mxu0 0.0
        %546 = vmatprep.mubr.f32.mxu0 0.0
        %547 = vmatmul.mubr.f32.gmra.mxu0 %v480
        %v548 = vpop.f32.mrf.mxu0
        %v549 = vadd.f32 0.0, %v548
        %v550 = vpop.f32.mrf.mxu0
        %551 = vdwg.mxu0
        %553 = vset.pattern.permute.xlu0 0
        %554 = vperm.xlu0 %553, %v461
        %v555 = vpop.permute.xlu0 %554
        %v557 = vmul.f32 %v555, %v376
        %v558 = vadd.f32 %v557, %v549
        %559 = vrot.lane.b32.xlu0 %v369, 120
        %v560 = vpop.permute.xlu0 %559
        %561 = vrot.lane.b32.xlu0 %v370, 120
        %v562 = vpop.permute.xlu0 %561
        %v563 = vsel %vm377, %v560, 0
        %v565 = vsel %vm377, %v562, 0
        %567 = vmatprep.subr.mxu0 0.0
        %568 = vmatpush1.xpose.msra.mxu0 0.0
        %569 = vmatprep.subr.mxu0 0.0
        %570 = vmatpush1.xpose.msra.mxu0 0.0
        %571 = vmatprep.subr.mxu0 0.0
        %572 = vmatpush1.xpose.msra.mxu0 0.0
        %573 = vmatprep.subr.mxu0 0.0
        %574 = vmatpush1.xpose.msra.mxu0 0.0
        %575 = vmatprep.subr.mxu0 0.0
        %576 = vmatpush1.xpose.msra.mxu0 0.0
        %577 = vmatprep.subr.mxu0 0.0
        %578 = vmatpush1.xpose.msra.mxu0 0.0
        %579 = vmatprep.subr.mxu0 0.0
        %580 = vmatpush1.xpose.msra.mxu0 0.0
        %581 = vmatprep.subr.mxu0 0.0
        %582 = vmatpush1.xpose.msra.mxu0 0.0
        %583 = vmatprep.subr.mxu0 0.0
        %584 = vmatpush1.xpose.msra.mxu0 0.0
        %585 = vmatprep.subr.mxu0 0.0
        %586 = vmatpush1.xpose.msra.mxu0 0.0
        %587 = vmatprep.subr.mxu0 0.0
        %588 = vmatpush1.xpose.msra.mxu0 0.0
        %589 = vmatprep.subr.mxu0 0.0
        %590 = vmatpush1.xpose.msra.mxu0 0.0
        %591 = vmatprep.subr.mxu0 0.0
        %592 = vmatpush1.xpose.msra.mxu0 0.0
        %593 = vmatprep.subr.mxu0 0.0
        %594 = vmatpush1.xpose.msra.mxu0 0.0
        %595 = vmatprep.subr.mxu0 0.0
        %596 = vmatpush1.xpose.msra.mxu0 0.0
        %597 = vmatprep.subr.mxu0 0.0
        %598 = vmatpush1.xpose.msra.mxu0 %v565
        %599 = vmatprep.subr.mxu0 0.0
        %600 = vmatpush2.xpose.msra.mxu0 0.0
        %601 = vmatprep.subr.mxu0 0.0
        %602 = vmatpush2.xpose.msra.mxu0 0.0
        %603 = vmatprep.subr.mxu0 0.0
        %604 = vmatpush2.xpose.msra.mxu0 0.0
        %605 = vmatprep.subr.mxu0 0.0
        %606 = vmatpush2.xpose.msra.mxu0 0.0
        %607 = vmatprep.subr.mxu0 0.0
        %608 = vmatpush2.xpose.msra.mxu0 0.0
        %609 = vmatprep.subr.mxu0 0.0
        %610 = vmatpush2.xpose.msra.mxu0 0.0
        %611 = vmatprep.subr.mxu0 0.0
        %612 = vmatpush2.xpose.msra.mxu0 0.0
        %613 = vmatprep.subr.mxu0 0.0
        %614 = vmatpush2.xpose.msra.mxu0 0.0
        %615 = vmatprep.subr.mxu0 0.0
        %616 = vmatpush2.xpose.msra.mxu0 0.0
        %617 = vmatprep.subr.mxu0 0.0
        %618 = vmatpush2.xpose.msra.mxu0 0.0
        %619 = vmatprep.subr.mxu0 0.0
        %620 = vmatpush2.xpose.msra.mxu0 0.0
        %621 = vmatprep.subr.mxu0 0.0
        %622 = vmatpush2.xpose.msra.mxu0 0.0
        %623 = vmatprep.subr.mxu0 0.0
        %624 = vmatpush2.xpose.msra.mxu0 0.0
        %625 = vmatprep.subr.mxu0 0.0
        %626 = vmatpush2.xpose.msra.mxu0 0.0
        %627 = vmatprep.subr.mxu0 0.0
        %628 = vmatpush2.xpose.msra.mxu0 0.0
        %629 = vmatprep.subr.mxu0 0.0
        %630 = vmatpush2.xpose.msra.mxu0 0.0
        %631 = vmatprep.mubr.f32.mxu0 0.0
        %632 = vmatmul.mubr.f32.gmra.mxu0 %v563
        %v633 = vpop.f32.mrf.mxu0
        %v634 = vadd.f32 %v375, %v633
        %v635 = vpop.f32.mrf.mxu0
        %636 = vdwg.mxu0
        %s637 = scalar_lea.vmem [#allocation3], 8
        %v638 = vld [vmem:[%s637] sm:$0xff]
        %v639 = vsel %vm377, %v634, -inf
        %640 = vmax.xlane.f32.xlu0 %v639
        %v641 = vpop.xlane.xlu0 %640
        %v642 = vmax.f32 %v638, %v641
        %v643 = vsub.f32 %v638, %v642
        %v644 = vmul.f32 %v643, 1.442695
        %v645 = vpow.pop %v644
        %647 = vset.pattern.permute.xlu0 0
        %648 = vperm.xlu0 %647, %v642
        %v649 = vpop.permute.xlu0 %648
        %v651 = vsub.f32 %v634, %v649
        %v652 = vmul.f32 %v651, 1.442695
        %v653 = vpow.pop %v652
        %s654 = scalar_lea.vmem [#allocation4], 8
        %v655 = vld [vmem:[%s654] sm:$0xff]
        %v656 = vmul.f32 %v645, %v655
        %v657 = vsel %vm377, %v653, 0.0
        %658 = vadd.xlane.f32.xlu0 %v657
        %v659 = vpop.xlane.xlu0 %658
        %v660 = vadd.f32 %v656, %v659
        %661 = vst.msk [vmem:[%s654] sm:$0xff] %vm476, %v660
        %662 = vst.msk [vmem:[%s637] sm:$0xff] %vm476, %v642
        %664 = vrot.lane.b32.xlu0 %v371, 120
        %v665 = vpop.permute.xlu0 %664
        %v668 = vsel %vm377, %v653, 0
        %670 = vmatprep.subr.mxu0 0.0
        %671 = vmatpush1.msra.mxu0 0.0
        %672 = vmatprep.subr.mxu0 0.0
        %673 = vmatpush1.msra.mxu0 0.0
        %674 = vmatprep.subr.mxu0 0.0
        %675 = vmatpush1.msra.mxu0 0.0
        %676 = vmatprep.subr.mxu0 0.0
        %677 = vmatpush1.msra.mxu0 0.0
        %678 = vmatprep.subr.mxu0 0.0
        %679 = vmatpush1.msra.mxu0 0.0
        %680 = vmatprep.subr.mxu0 0.0
        %681 = vmatpush1.msra.mxu0 0.0
        %682 = vmatprep.subr.mxu0 0.0
        %683 = vmatpush1.msra.mxu0 0.0
        %684 = vmatprep.subr.mxu0 0.0
        %685 = vmatpush1.msra.mxu0 0.0
        %686 = vmatprep.subr.mxu0 0.0
        %687 = vmatpush1.msra.mxu0 0.0
        %688 = vmatprep.subr.mxu0 0.0
        %689 = vmatpush1.msra.mxu0 0.0
        %690 = vmatprep.subr.mxu0 0.0
        %691 = vmatpush1.msra.mxu0 0.0
        %692 = vmatprep.subr.mxu0 0.0
        %693 = vmatpush1.msra.mxu0 0.0
        %694 = vmatprep.subr.mxu0 0.0
        %695 = vmatpush1.msra.mxu0 0.0
        %696 = vmatprep.subr.mxu0 0.0
        %697 = vmatpush1.msra.mxu0 0.0
        %698 = vmatprep.subr.mxu0 0.0
        %699 = vmatpush1.msra.mxu0 0.0
        %700 = vmatprep.subr.mxu0 0.0
        %701 = vmatpush1.msra.mxu0 %v665
        %702 = vmatprep.subr.mxu0 0.0
        %703 = vmatpush2.msra.mxu0 0.0
        %704 = vmatprep.subr.mxu0 0.0
        %705 = vmatpush2.msra.mxu0 0.0
        %706 = vmatprep.subr.mxu0 0.0
        %707 = vmatpush2.msra.mxu0 0.0
        %708 = vmatprep.subr.mxu0 0.0
        %709 = vmatpush2.msra.mxu0 0.0
        %710 = vmatprep.subr.mxu0 0.0
        %711 = vmatpush2.msra.mxu0 0.0
        %712 = vmatprep.subr.mxu0 0.0
        %713 = vmatpush2.msra.mxu0 0.0
        %714 = vmatprep.subr.mxu0 0.0
        %715 = vmatpush2.msra.mxu0 0.0
        %716 = vmatprep.subr.mxu0 0.0
        %717 = vmatpush2.msra.mxu0 0.0
        %718 = vmatprep.subr.mxu0 0.0
        %719 = vmatpush2.msra.mxu0 0.0
        %720 = vmatprep.subr.mxu0 0.0
        %721 = vmatpush2.msra.mxu0 0.0
        %722 = vmatprep.subr.mxu0 0.0
        %723 = vmatpush2.msra.mxu0 0.0
        %724 = vmatprep.subr.mxu0 0.0
        %725 = vmatpush2.msra.mxu0 0.0
        %726 = vmatprep.subr.mxu0 0.0
        %727 = vmatpush2.msra.mxu0 0.0
        %728 = vmatprep.subr.mxu0 0.0
        %729 = vmatpush2.msra.mxu0 0.0
        %730 = vmatprep.subr.mxu0 0.0
        %731 = vmatpush2.msra.mxu0 0.0
        %732 = vmatprep.subr.mxu0 0.0
        %733 = vmatpush2.msra.mxu0 0.0
        %734 = vmatprep.mubr.f32.mxu0 0.0
        %735 = vmatmul.mubr.f32.gmra.mxu0 %v668
        %v736 = vpop.f32.mrf.mxu0
        %v737 = vadd.f32 0.0, %v736
        %v738 = vpop.f32.mrf.mxu0
        %739 = vdwg.mxu0
        %741 = vset.pattern.permute.xlu0 0
        %742 = vperm.xlu0 %741, %v645
        %v743 = vpop.permute.xlu0 %742
        %v745 = vmul.f32 %v743, %v376
        %747 = vrot.lane.b32.xlu0 %v737, 8
        %v748 = vpop.permute.xlu0 %747
        %v750 = vadd.f32 %v745, %v748
        %751 = vrot.lane.b32.xlu0 %v369, 112
        %v752 = vpop.permute.xlu0 %751
        %753 = vrot.lane.b32.xlu0 %v370, 112
        %v754 = vpop.permute.xlu0 %753
        %v755 = vsel %vm377, %v752, 0
        %v757 = vsel %vm377, %v754, 0
        %759 = vmatprep.subr.mxu0 0.0
        %760 = vmatpush1.xpose.msra.mxu0 0.0
        %761 = vmatprep.subr.mxu0 0.0
        %762 = vmatpush1.xpose.msra.mxu0 0.0
        %763 = vmatprep.subr.mxu0 0.0
        %764 = vmatpush1.xpose.msra.mxu0 0.0
        %765 = vmatprep.subr.mxu0 0.0
        %766 = vmatpush1.xpose.msra.mxu0 0.0
        %767 = vmatprep.subr.mxu0 0.0
        %768 = vmatpush1.xpose.msra.mxu0 0.0
        %769 = vmatprep.subr.mxu0 0.0
        %770 = vmatpush1.xpose.msra.mxu0 0.0
        %771 = vmatprep.subr.mxu0 0.0
        %772 = vmatpush1.xpose.msra.mxu0 0.0
        %773 = vmatprep.subr.mxu0 0.0
        %774 = vmatpush1.xpose.msra.mxu0 0.0
        %775 = vmatprep.subr.mxu0 0.0
        %776 = vmatpush1.xpose.msra.mxu0 0.0
        %777 = vmatprep.subr.mxu0 0.0
        %778 = vmatpush1.xpose.msra.mxu0 0.0
        %779 = vmatprep.subr.mxu0 0.0
        %780 = vmatpush1.xpose.msra.mxu0 0.0
        %781 = vmatprep.subr.mxu0 0.0
        %782 = vmatpush1.xpose.msra.mxu0 0.0
        %783 = vmatprep.subr.mxu0 0.0
        %784 = vmatpush1.xpose.msra.mxu0 0.0
        %785 = vmatprep.subr.mxu0 0.0
        %786 = vmatpush1.xpose.msra.mxu0 0.0
        %787 = vmatprep.subr.mxu0 0.0
        %788 = vmatpush1.xpose.msra.mxu0 0.0
        %789 = vmatprep.subr.mxu0 0.0
        %790 = vmatpush1.xpose.msra.mxu0 %v757
        %791 = vmatprep.subr.mxu0 0.0
        %792 = vmatpush2.xpose.msra.mxu0 0.0
        %793 = vmatprep.subr.mxu0 0.0
        %794 = vmatpush2.xpose.msra.mxu0 0.0
        %795 = vmatprep.subr.mxu0 0.0
        %796 = vmatpush2.xpose.msra.mxu0 0.0
        %797 = vmatprep.subr.mxu0 0.0
        %798 = vmatpush2.xpose.msra.mxu0 0.0
        %799 = vmatprep.subr.mxu0 0.0
        %800 = vmatpush2.xpose.msra.mxu0 0.0
        %801 = vmatprep.subr.mxu0 0.0
        %802 = vmatpush2.xpose.msra.mxu0 0.0
        %803 = vmatprep.subr.mxu0 0.0
        %804 = vmatpush2.xpose.msra.mxu0 0.0
        %805 = vmatprep.subr.mxu0 0.0
        %806 = vmatpush2.xpose.msra.mxu0 0.0
        %807 = vmatprep.subr.mxu0 0.0
        %808 = vmatpush2.xpose.msra.mxu0 0.0
        %809 = vmatprep.subr.mxu0 0.0
        %810 = vmatpush2.xpose.msra.mxu0 0.0
        %811 = vmatprep.subr.mxu0 0.0
        %812 = vmatpush2.xpose.msra.mxu0 0.0
        %813 = vmatprep.subr.mxu0 0.0
        %814 = vmatpush2.xpose.msra.mxu0 0.0
        %815 = vmatprep.subr.mxu0 0.0
        %816 = vmatpush2.xpose.msra.mxu0 0.0
        %817 = vmatprep.subr.mxu0 0.0
        %818 = vmatpush2.xpose.msra.mxu0 0.0
        %819 = vmatprep.subr.mxu0 0.0
        %820 = vmatpush2.xpose.msra.mxu0 0.0
        %821 = vmatprep.subr.mxu0 0.0
        %822 = vmatpush2.xpose.msra.mxu0 0.0
        %823 = vmatprep.mubr.f32.mxu0 0.0
        %824 = vmatmul.mubr.f32.gmra.mxu0 %v755
        %v825 = vpop.f32.mrf.mxu0
        %v826 = vadd.f32 %v375, %v825
        %v827 = vpop.f32.mrf.mxu0
        %828 = vdwg.mxu0
        %s829 = scalar_lea.vmem [#allocation3], 16
        %v830 = vld [vmem:[%s829] sm:$0xff]
        %v831 = vsel %vm377, %v826, -inf
        %832 = vmax.xlane.f32.xlu0 %v831
        %v833 = vpop.xlane.xlu0 %832
        %v834 = vmax.f32 %v830, %v833
        %v835 = vsub.f32 %v830, %v834
        %v836 = vmul.f32 %v835, 1.442695
        %v837 = vpow.pop %v836
        %839 = vset.pattern.permute.xlu0 0
        %840 = vperm.xlu0 %839, %v834
        %v841 = vpop.permute.xlu0 %840
        %v843 = vsub.f32 %v826, %v841
        %v844 = vmul.f32 %v843, 1.442695
        %v845 = vpow.pop %v844
        %s846 = scalar_lea.vmem [#allocation4], 16
        %v847 = vld [vmem:[%s846] sm:$0xff]
        %v848 = vmul.f32 %v837, %v847
        %v849 = vsel %vm377, %v845, 0.0
        %850 = vadd.xlane.f32.xlu0 %v849
        %v851 = vpop.xlane.xlu0 %850
        %v852 = vadd.f32 %v848, %v851
        %853 = vst.msk [vmem:[%s846] sm:$0xff] %vm476, %v852
        %854 = vst.msk [vmem:[%s829] sm:$0xff] %vm476, %v834
        %855 = vrot.lane.b32.xlu0 %v371, 112
        %v856 = vpop.permute.xlu0 %855
        %v859 = vsel %vm377, %v845, 0
        %861 = vmatprep.subr.mxu0 0.0
        %862 = vmatpush1.msra.mxu0 0.0
        %863 = vmatprep.subr.mxu0 0.0
        %864 = vmatpush1.msra.mxu0 0.0
        %865 = vmatprep.subr.mxu0 0.0
        %866 = vmatpush1.msra.mxu0 0.0
        %867 = vmatprep.subr.mxu0 0.0
        %868 = vmatpush1.msra.mxu0 0.0
        %869 = vmatprep.subr.mxu0 0.0
        %870 = vmatpush1.msra.mxu0 0.0
        %871 = vmatprep.subr.mxu0 0.0
        %872 = vmatpush1.msra.mxu0 0.0
        %873 = vmatprep.subr.mxu0 0.0
        %874 = vmatpush1.msra.mxu0 0.0
        %875 = vmatprep.subr.mxu0 0.0
        %876 = vmatpush1.msra.mxu0 0.0
        %877 = vmatprep.subr.mxu0 0.0
        %878 = vmatpush1.msra.mxu0 0.0
        %879 = vmatprep.subr.mxu0 0.0
        %880 = vmatpush1.msra.mxu0 0.0
        %881 = vmatprep.subr.mxu0 0.0
        %882 = vmatpush1.msra.mxu0 0.0
        %883 = vmatprep.subr.mxu0 0.0
        %884 = vmatpush1.msra.mxu0 0.0
        %885 = vmatprep.subr.mxu0 0.0
        %886 = vmatpush1.msra.mxu0 0.0
        %887 = vmatprep.subr.mxu0 0.0
        %888 = vmatpush1.msra.mxu0 0.0
        %889 = vmatprep.subr.mxu0 0.0
        %890 = vmatpush1.msra.mxu0 0.0
        %891 = vmatprep.subr.mxu0 0.0
        %892 = vmatpush1.msra.mxu0 %v856
        %893 = vmatprep.subr.mxu0 0.0
        %894 = vmatpush2.msra.mxu0 0.0
        %895 = vmatprep.subr.mxu0 0.0
        %896 = vmatpush2.msra.mxu0 0.0
        %897 = vmatprep.subr.mxu0 0.0
        %898 = vmatpush2.msra.mxu0 0.0
        %899 = vmatprep.subr.mxu0 0.0
        %900 = vmatpush2.msra.mxu0 0.0
        %901 = vmatprep.subr.mxu0 0.0
        %902 = vmatpush2.msra.mxu0 0.0
        %903 = vmatprep.subr.mxu0 0.0
        %904 = vmatpush2.msra.mxu0 0.0
        %905 = vmatprep.subr.mxu0 0.0
        %906 = vmatpush2.msra.mxu0 0.0
        %907 = vmatprep.subr.mxu0 0.0
        %908 = vmatpush2.msra.mxu0 0.0
        %909 = vmatprep.subr.mxu0 0.0
        %910 = vmatpush2.msra.mxu0 0.0
        %911 = vmatprep.subr.mxu0 0.0
        %912 = vmatpush2.msra.mxu0 0.0
        %913 = vmatprep.subr.mxu0 0.0
        %914 = vmatpush2.msra.mxu0 0.0
        %915 = vmatprep.subr.mxu0 0.0
        %916 = vmatpush2.msra.mxu0 0.0
        %917 = vmatprep.subr.mxu0 0.0
        %918 = vmatpush2.msra.mxu0 0.0
        %919 = vmatprep.subr.mxu0 0.0
        %920 = vmatpush2.msra.mxu0 0.0
        %921 = vmatprep.subr.mxu0 0.0
        %922 = vmatpush2.msra.mxu0 0.0
        %923 = vmatprep.subr.mxu0 0.0
        %924 = vmatpush2.msra.mxu0 0.0
        %925 = vmatprep.mubr.f32.mxu0 0.0
        %926 = vmatmul.mubr.f32.gmra.mxu0 %v859
        %v927 = vpop.f32.mrf.mxu0
        %v928 = vadd.f32 0.0, %v927
        %v929 = vpop.f32.mrf.mxu0
        %930 = vdwg.mxu0
        %932 = vset.pattern.permute.xlu0 0
        %933 = vperm.xlu0 %932, %v837
        %v934 = vpop.permute.xlu0 %933
        %v936 = vmul.f32 %v934, %v376
        %938 = vrot.lane.b32.xlu0 %v928, 16
        %v939 = vpop.permute.xlu0 %938
        %v941 = vadd.f32 %v936, %v939
        %942 = vrot.lane.b32.xlu0 %v369, 104
        %v943 = vpop.permute.xlu0 %942
        %944 = vrot.lane.b32.xlu0 %v370, 104
        %v945 = vpop.permute.xlu0 %944
        %v946 = vsel %vm377, %v943, 0
        %v948 = vsel %vm377, %v945, 0
        %950 = vmatprep.subr.mxu0 0.0
        %951 = vmatpush1.xpose.msra.mxu0 0.0
        %952 = vmatprep.subr.mxu0 0.0
        %953 = vmatpush1.xpose.msra.mxu0 0.0
        %954 = vmatprep.subr.mxu0 0.0
        %955 = vmatpush1.xpose.msra.mxu0 0.0
        %956 = vmatprep.subr.mxu0 0.0
        %957 = vmatpush1.xpose.msra.mxu0 0.0
        %958 = vmatprep.subr.mxu0 0.0
        %959 = vmatpush1.xpose.msra.mxu0 0.0
        %960 = vmatprep.subr.mxu0 0.0
        %961 = vmatpush1.xpose.msra.mxu0 0.0
        %962 = vmatprep.subr.mxu0 0.0
        %963 = vmatpush1.xpose.msra.mxu0 0.0
        %964 = vmatprep.subr.mxu0 0.0
        %965 = vmatpush1.xpose.msra.mxu0 0.0
        %966 = vmatprep.subr.mxu0 0.0
        %967 = vmatpush1.xpose.msra.mxu0 0.0
        %968 = vmatprep.subr.mxu0 0.0
        %969 = vmatpush1.xpose.msra.mxu0 0.0
        %970 = vmatprep.subr.mxu0 0.0
        %971 = vmatpush1.xpose.msra.mxu0 0.0
        %972 = vmatprep.subr.mxu0 0.0
        %973 = vmatpush1.xpose.msra.mxu0 0.0
        %974 = vmatprep.subr.mxu0 0.0
        %975 = vmatpush1.xpose.msra.mxu0 0.0
        %976 = vmatprep.subr.mxu0 0.0
        %977 = vmatpush1.xpose.msra.mxu0 0.0
        %978 = vmatprep.subr.mxu0 0.0
        %979 = vmatpush1.xpose.msra.mxu0 0.0
        %980 = vmatprep.subr.mxu0 0.0
        %981 = vmatpush1.xpose.msra.mxu0 %v948
        %982 = vmatprep.subr.mxu0 0.0
        %983 = vmatpush2.xpose.msra.mxu0 0.0
        %984 = vmatprep.subr.mxu0 0.0
        %985 = vmatpush2.xpose.msra.mxu0 0.0
        %986 = vmatprep.subr.mxu0 0.0
        %987 = vmatpush2.xpose.msra.mxu0 0.0
        %988 = vmatprep.subr.mxu0 0.0
        %989 = vmatpush2.xpose.msra.mxu0 0.0
        %990 = vmatprep.subr.mxu0 0.0
        %991 = vmatpush2.xpose.msra.mxu0 0.0
        %992 = vmatprep.subr.mxu0 0.0
        %993 = vmatpush2.xpose.msra.mxu0 0.0
        %994 = vmatprep.subr.mxu0 0.0
        %995 = vmatpush2.xpose.msra.mxu0 0.0
        %996 = vmatprep.subr.mxu0 0.0
        %997 = vmatpush2.xpose.msra.mxu0 0.0
        %998 = vmatprep.subr.mxu0 0.0
        %999 = vmatpush2.xpose.msra.mxu0 0.0
        %1000 = vmatprep.subr.mxu0 0.0
        %1001 = vmatpush2.xpose.msra.mxu0 0.0
        %1002 = vmatprep.subr.mxu0 0.0
        %1003 = vmatpush2.xpose.msra.mxu0 0.0
        %1004 = vmatprep.subr.mxu0 0.0
        %1005 = vmatpush2.xpose.msra.mxu0 0.0
        %1006 = vmatprep.subr.mxu0 0.0
        %1007 = vmatpush2.xpose.msra.mxu0 0.0
        %1008 = vmatprep.subr.mxu0 0.0
        %1009 = vmatpush2.xpose.msra.mxu0 0.0
        %1010 = vmatprep.subr.mxu0 0.0
        %1011 = vmatpush2.xpose.msra.mxu0 0.0
        %1012 = vmatprep.subr.mxu0 0.0
        %1013 = vmatpush2.xpose.msra.mxu0 0.0
        %1014 = vmatprep.mubr.f32.mxu0 0.0
        %1015 = vmatmul.mubr.f32.gmra.mxu0 %v946
        %v1016 = vpop.f32.mrf.mxu0
        %v1017 = vadd.f32 %v375, %v1016
        %v1018 = vpop.f32.mrf.mxu0
        %1019 = vdwg.mxu0
        %s1020 = scalar_lea.vmem [#allocation3], 24
        %v1021 = vld [vmem:[%s1020] sm:$0xff]
        %v1022 = vsel %vm377, %v1017, -inf
        %1023 = vmax.xlane.f32.xlu0 %v1022
        %v1024 = vpop.xlane.xlu0 %1023
        %v1025 = vmax.f32 %v1021, %v1024
        %v1026 = vsub.f32 %v1021, %v1025
        %v1027 = vmul.f32 %v1026, 1.442695
        %v1028 = vpow.pop %v1027
        %1030 = vset.pattern.permute.xlu0 0
        %1031 = vperm.xlu0 %1030, %v1025
        %v1032 = vpop.permute.xlu0 %1031
        %v1034 = vsub.f32 %v1017, %v1032
        %v1035 = vmul.f32 %v1034, 1.442695
        %v1036 = vpow.pop %v1035
        %s1037 = scalar_lea.vmem [#allocation4], 24
        %v1038 = vld [vmem:[%s1037] sm:$0xff]
        %v1039 = vmul.f32 %v1028, %v1038
        %v1040 = vsel %vm377, %v1036, 0.0
        %1041 = vadd.xlane.f32.xlu0 %v1040
        %v1042 = vpop.xlane.xlu0 %1041
        %v1043 = vadd.f32 %v1039, %v1042
        %1044 = vst.msk [vmem:[%s1037] sm:$0xff] %vm476, %v1043
        %1045 = vst.msk [vmem:[%s1020] sm:$0xff] %vm476, %v1025
        %1046 = vrot.lane.b32.xlu0 %v371, 104
        %v1047 = vpop.permute.xlu0 %1046
        %v1050 = vsel %vm377, %v1036, 0
        %1052 = vmatprep.subr.mxu0 0.0
        %1053 = vmatpush1.msra.mxu0 0.0
        %1054 = vmatprep.subr.mxu0 0.0
        %1055 = vmatpush1.msra.mxu0 0.0
        %1056 = vmatprep.subr.mxu0 0.0
        %1057 = vmatpush1.msra.mxu0 0.0
        %1058 = vmatprep.subr.mxu0 0.0
        %1059 = vmatpush1.msra.mxu0 0.0
        %1060 = vmatprep.subr.mxu0 0.0
        %1061 = vmatpush1.msra.mxu0 0.0
        %1062 = vmatprep.subr.mxu0 0.0
        %1063 = vmatpush1.msra.mxu0 0.0
        %1064 = vmatprep.subr.mxu0 0.0
        %1065 = vmatpush1.msra.mxu0 0.0
        %1066 = vmatprep.subr.mxu0 0.0
        %1067 = vmatpush1.msra.mxu0 0.0
        %1068 = vmatprep.subr.mxu0 0.0
        %1069 = vmatpush1.msra.mxu0 0.0
        %1070 = vmatprep.subr.mxu0 0.0
        %1071 = vmatpush1.msra.mxu0 0.0
        %1072 = vmatprep.subr.mxu0 0.0
        %1073 = vmatpush1.msra.mxu0 0.0
        %1074 = vmatprep.subr.mxu0 0.0
        %1075 = vmatpush1.msra.mxu0 0.0
        %1076 = vmatprep.subr.mxu0 0.0
        %1077 = vmatpush1.msra.mxu0 0.0
        %1078 = vmatprep.subr.mxu0 0.0
        %1079 = vmatpush1.msra.mxu0 0.0
        %1080 = vmatprep.subr.mxu0 0.0
        %1081 = vmatpush1.msra.mxu0 0.0
        %1082 = vmatprep.subr.mxu0 0.0
        %1083 = vmatpush1.msra.mxu0 %v1047
        %1084 = vmatprep.subr.mxu0 0.0
        %1085 = vmatpush2.msra.mxu0 0.0
        %1086 = vmatprep.subr.mxu0 0.0
        %1087 = vmatpush2.msra.mxu0 0.0
        %1088 = vmatprep.subr.mxu0 0.0
        %1089 = vmatpush2.msra.mxu0 0.0
        %1090 = vmatprep.subr.mxu0 0.0
        %1091 = vmatpush2.msra.mxu0 0.0
        %1092 = vmatprep.subr.mxu0 0.0
        %1093 = vmatpush2.msra.mxu0 0.0
        %1094 = vmatprep.subr.mxu0 0.0
        %1095 = vmatpush2.msra.mxu0 0.0
        %1096 = vmatprep.subr.mxu0 0.0
        %1097 = vmatpush2.msra.mxu0 0.0
        %1098 = vmatprep.subr.mxu0 0.0
        %1099 = vmatpush2.msra.mxu0 0.0
        %1100 = vmatprep.subr.mxu0 0.0
        %1101 = vmatpush2.msra.mxu0 0.0
        %1102 = vmatprep.subr.mxu0 0.0
        %1103 = vmatpush2.msra.mxu0 0.0
        %1104 = vmatprep.subr.mxu0 0.0
        %1105 = vmatpush2.msra.mxu0 0.0
        %1106 = vmatprep.subr.mxu0 0.0
        %1107 = vmatpush2.msra.mxu0 0.0
        %1108 = vmatprep.subr.mxu0 0.0
        %1109 = vmatpush2.msra.mxu0 0.0
        %1110 = vmatprep.subr.mxu0 0.0
        %1111 = vmatpush2.msra.mxu0 0.0
        %1112 = vmatprep.subr.mxu0 0.0
        %1113 = vmatpush2.msra.mxu0 0.0
        %1114 = vmatprep.subr.mxu0 0.0
        %1115 = vmatpush2.msra.mxu0 0.0
        %1116 = vmatprep.mubr.f32.mxu0 0.0
        %1117 = vmatmul.mubr.f32.gmra.mxu0 %v1050
        %v1118 = vpop.f32.mrf.mxu0
        %v1119 = vadd.f32 0.0, %v1118
        %v1120 = vpop.f32.mrf.mxu0
        %1121 = vdwg.mxu0
        %1123 = vset.pattern.permute.xlu0 0
        %1124 = vperm.xlu0 %1123, %v1028
        %v1125 = vpop.permute.xlu0 %1124
        %v1127 = vmul.f32 %v1125, %v376
        %1129 = vrot.lane.b32.xlu0 %v1119, 24
        %v1130 = vpop.permute.xlu0 %1129
        %v1132 = vadd.f32 %v1127, %v1130
        %v1133 = vsel %vm377, %v558, %v750
        %vm1134 = vcmask 130048
        %v1135 = vsel %vm1134, %v1133, %v941
        %vm1136 = vcmask 195584
        %v1137 = vsel %vm1136, %v1135, %v1132
        %vm1138 = vcmask 261120
        %1139 = vst.msk [vmem:[#allocation2] sm:$0xff] %vm1138, %v1137
        // Predicated region
        $region53: #{tpu_custom_call.1} parent=35 // pred_check
          %p1140 = pneg %p353
        $region54: #{tpu_custom_call.1} parent=35 // pred_check_branch
          %1142 = sbr.rel (%p1140) target = $region56
        $region55: #{tpu_custom_call.1} parent=35 // pred_region
          %v1143 = vld [vmem:[#allocation2] sm:$0xff]
          %v1144 = vld [vmem:[#allocation4] sm:$0xff]
          %v1145 = vrcp.pop %v1144
          %1147 = vset.pattern.permute.xlu0 0
          %1148 = vperm.xlu0 %1147, %v1145
          %v1149 = vpop.permute.xlu0 %1148
          %v1151 = vmul.f32 %v1143, %v1149
          %v1152 = vld [vmem:[%s654] sm:$0xff]
          %v1153 = vrcp.pop %v1152
          %1155 = vset.pattern.permute.xlu0 0
          %1156 = vperm.xlu0 %1155, %v1153
          %v1157 = vpop.permute.xlu0 %1156
          %v1159 = vmul.f32 %v1143, %v1157
          %v1160 = vld [vmem:[%s846] sm:$0xff]
          %v1161 = vrcp.pop %v1160
          %1163 = vset.pattern.permute.xlu0 0
          %1164 = vperm.xlu0 %1163, %v1161
          %v1165 = vpop.permute.xlu0 %1164
          %v1167 = vmul.f32 %v1143, %v1165
          %v1168 = vld [vmem:[%s1037] sm:$0xff]
          %v1169 = vrcp.pop %v1168
          %1171 = vset.pattern.permute.xlu0 0
          %1172 = vperm.xlu0 %1171, %v1169
          %v1173 = vpop.permute.xlu0 %1172
          %v1175 = vmul.f32 %v1143, %v1173
          %v1176 = vsel %vm377, %v1151, %v1159
          %v1177 = vsel %vm1134, %v1176, %v1167
          %v1178 = vsel %vm1136, %v1177, %v1175
          %1179 = vst.msk [vmem:[%s342] sm:$0xff] %vm1138, %v1178
        $region56: #{tpu_custom_call.1} parent=35 // pred_fallthru
          _
        %s1180 = sand.u32 %s167, 1
        %s1181 = scalar_lea.sflag [#allocation7], %s1180
        %s1182 = sand.u32 %s167, 1
        %s1183 = smul.addr %s1182, 8
        %s1184 = scalar_lea.vmem [#allocation11], %s1183
        // Predicated region
        $region57: #{tpu_custom_call.1} parent=35 // pred_check
          %p1185 = pneg %p177
        $region58: #{tpu_custom_call.1} parent=35 // pred_check_branch
          %1187 = sbr.rel (%p1185) target = $region60
        $region59: #{tpu_custom_call.1} parent=35 // pred_region
          %s1189 = ssub.s32 128, 128
          %1190 = vsyncadd %s1181, %s1189
          %s1191 = sadd.s32 %s30, %s29
          %s1192 = smul.addr %s1191, 128
          %s1193 = scalar_lea.hbm %s4, %s1192
          %s1195 = sshll.u32 %s1184, 4
          %s1196 = int_to_ptr.vmem [resolvable:$true] %s1195
          %1198 = dma.vmem_to_hbm [thread:$0]  %s1196, 128, %s1193, %s1181
        $region60: #{tpu_custom_call.1} parent=35 // pred_fallthru
          _
      $region36: #{tpu_custom_call.1} parent=5 // pred_fallthru
        _
      %p1199 = scmp.le.s32.totalorder 2, %s19
      // Predicated region
      $region61: #{tpu_custom_call.1} parent=5 // pred_check
        %p1200 = pneg %p1199
      $region62: #{tpu_custom_call.1} parent=5 // pred_check_branch
        %1202 = sbr.rel (%p1200) target = $region64
      $region63: #{tpu_custom_call.1} parent=5 // pred_region
        %s1203 = ssub.s32 %s19, 2
        // Predicated region
        $region65: #{tpu_custom_call.1} parent=63 // pred_check
          %p1204 = pneg %p183
        $region66: #{tpu_custom_call.1} parent=63 // pred_check_branch
          %1206 = sbr.rel (%p1204) target = $region68
        $region67: #{tpu_custom_call.1} parent=63 // pred_region
          %s1207 = sand.u32 %s168, 1
          %s1208 = scalar_lea.sflag [#allocation7], %s1207
          %s1209 = sand.u32 %s168, 1
          %s1210 = smul.addr %s1209, 8
          %s1211 = scalar_lea.vmem [#allocation11], %s1210
          %1212 = dma.done %s1208, 128
        $region68: #{tpu_custom_call.1} parent=63 // pred_fallthru
          _
      $region64: #{tpu_custom_call.1} parent=5 // pred_fallthru
        _
    $region6: #{tpu_custom_call.1} parent=1 // loop_footer
      %s23 = sadd.s32 1, %s19
    $region7: #{tpu_custom_call.1} parent=1 // loop_footer_branch
      %18 = sbr.rel target = $region3
    $region8: #{tpu_custom_call.1} parent=1 // loop_exit
      _
    %1213 = vsyncpa [#allocation6], 1
    %s1214 = scalar_lea.sflag [#allocation6], 1
    %1215 = vsyncpa %s1214, 1
    %1216 = vsyncpa [#allocation9], 1
    %s1217 = scalar_lea.sflag [#allocation9], 1
    %1218 = vsyncpa %s1217, 1
    %1219 = vsyncpa [#allocation7], 1
    %s1220 = scalar_lea.sflag [#allocation7], 1
    %1221 = vsyncpa %s1220, 1

</llo_original>
